<compile_context>
chip_gen: v7x
topology: tpu7x:2x2x1
jax: 0.10.0
libtpu: 0.0.40
codegen_flags: <defaults>
</compile_context>

<pallas_src>
import functools
import random

import numpy as np
import jax
import jax.numpy as jnp
from jax.experimental import pallas as pl
from jax.experimental.pallas import tpu as pltpu

HIDDEN = 32      # model hidden size (args.hidden_size)
HPAD = 128       # lane-padded width used ONLY for the readout projection / output slab
DEPTH = 3
VOCAB_SIZE = 20


# ----------------------------------------------------------------------------
# Pallas kernel: one grid step = one branch (0 = junction tree, 1 = mol graph)
# ----------------------------------------------------------------------------
def _encoder_kernel(depth,
                    fnode_ref, fmess_ref, amess_ref, anode_ref, pool_ref,
                    wi_ref, wh_ref, won_ref, woa_ref, bi_ref, bh_ref, bo_ref,
                    out_ref):
    """fnode : (NP, H)   bf16  node/atom features
       fmess : (MP, H)   bf16  pre-gathered source-node features per message
       amess : (MP, MP)  bf16  message -> incoming-message counts (col 0 == 0)
       anode : (NP, MP)  bf16  node    -> incoming-message counts (col 0 == 0)
       pool  : (BP, NP)  f32   per-molecule mean over its scope
       wi/wh : (H, H)    bf16;  won/woa : (H, HPAD) bf16 (cols >= H are zero)
       bi/bh : (1, H)    f32;   bo : (1, HPAD) f32 (lanes >= H are zero)
       out   : (BP, 2*HPAD) f32; this branch writes its own 128-lane block."""
    f32, bf16 = jnp.float32, jnp.bfloat16

    fmess = fmess_ref[...]
    amess = amess_ref[...]
    wi, wh = wi_ref[...], wh_ref[...]
    bi, bh = bi_ref[...], bh_ref[...]            # read once (hoisted)

    # input transform: relu(fmess @ W_i + b_i)   (bf16 operands, f32 accum)
    x = jnp.maximum(jnp.dot(fmess, wi, preferred_element_type=f32) + bi, 0.0)   # (MP, H)
    xb = x + bh                                  # bias add hoisted out of the depth loop
    h = x
    # message passing (depth - 1 updates), static unroll over a small fixed depth
    for _ in range(depth - 1):
        nei = jnp.dot(amess, h.astype(bf16), preferred_element_type=f32)        # (MP, H)
        h = jnp.maximum(
            xb + jnp.dot(nei.astype(bf16), wh, preferred_element_type=f32), 0.0)

    # node aggregation + split readout (no concat copy):
    #   node_h = relu(fnode @ Wo_node + agg @ Wo_agg + b_o)   -> (NP, HPAD) lane-dense
    agg = jnp.dot(anode_ref[...], h.astype(bf16), preferred_element_type=f32)   # (NP, H)
    node_h = jnp.maximum(
        jnp.dot(fnode_ref[...], won_ref[...], preferred_element_type=f32)
        + jnp.dot(agg.astype(bf16), woa_ref[...], preferred_element_type=f32)
        + bo_ref[...], 0.0)

    # readout: mean over each molecule's scope -> this branch's 128-lane block.
    # pool holds exact 1/len weights -> kept f32 (tiny (BP, NP) matmul).
    out_ref[...] = jnp.dot(pool_ref[...], node_h, preferred_element_type=f32)   # (BP, HPAD)


def _branch_spec(shape):
    """Leading dim = branch (grid axis); squeeze it, full extent elsewhere."""
    n = len(shape)
    return pl.BlockSpec((None,) + tuple(shape[1:]),
                        lambda b, _n=n: (b,) + (0,) * (_n - 1))


def encode_fused(fnode_s, fmess_s, amess_s, anode_s, pool_s,
                 wi_s, wh_s, won_s, woa_s, bi_s, bh_s, bo_s, depth=DEPTH):
    """Single fused pallas_call over both branches.  Returns (BP, nb*HPAD) f32."""
    nb = fnode_s.shape[0]
    bp = pool_s.shape[1]
    hp = won_s.shape[-1]
    args = (fnode_s, fmess_s, amess_s, anode_s, pool_s,
            wi_s, wh_s, won_s, woa_s, bi_s, bh_s, bo_s)
    return pl.pallas_call(
        functools.partial(_encoder_kernel, depth),
        out_shape=jax.ShapeDtypeStruct((bp, nb * hp), jnp.float32),
        grid_spec=pltpu.PrefetchScalarGridSpec(
            num_scalar_prefetch=0,
            grid=(nb,),
            in_specs=[_branch_spec(a.shape) for a in args],
            out_specs=pl.BlockSpec((bp, hp), lambda b: (0, b)),
        ),
        compiler_params=pltpu.CompilerParams(
            dimension_semantics=("parallel",),       # branches independent (2 TCs on v7x)
            vmem_limit_bytes=32 * 1024 * 1024,       # well under v7x 64 MiB per-TC VMEM
        ),
    )(*args)


# ----------------------------------------------------------------------------
# Host-side glue: tensorization (mirrors JTNN.tensorize) + densification
# ----------------------------------------------------------------------------
def tensorize(graphs):
    """graphs: list of (n_nodes, [(i, j) local undirected edges]).
    Returns N, M, fmess, node_graph, mess_graph, scope with the exact
    semantics (and duplicate-message quirk) of JTNN.tensorize."""
    scope, neighbors, offset = [], [], 0
    for n, edges in graphs:
        scope.append((offset, n))
        nb = [[] for _ in range(n)]
        for i, j in edges:
            nb[i].append(j)
            nb[j].append(i)
        for i in range(n):
            neighbors.append([offset + k for k in nb[i]])
        offset += n
    N = offset
    messages, mess_dict = [None], {}
    for x in range(N):
        for y in neighbors[x]:
            mess_dict[(x, y)] = len(messages); messages.append((x, y))
            mess_dict[(y, x)] = len(messages); messages.append((y, x))
    M = len(messages)
    fmess = [0] * M
    node_graph = [[] for _ in range(N)]
    mess_graph = [[] for _ in range(M)]
    for (x, y) in messages[1:]:
        mid1 = mess_dict[(x, y)]
        fmess[mid1] = x
        node_graph[y].append(mid1)
        for z in neighbors[y]:
            if z == x:
                continue
            mess_graph[mess_dict[(y, z)]].append(mid1)
    return N, M, fmess, node_graph, mess_graph, scope


def build_dense(N, M, fmess, node_graph, mess_graph, scope, n_pad, m_pad, b_pad):
    amess = np.zeros((m_pad, m_pad), np.float32)
    for m, lst in enumerate(mess_graph):
        for j in lst:
            if j != 0:                  # message 0 is the zero-padding slot
                amess[m, j] += 1.0
    anode = np.zeros((n_pad, m_pad), np.float32)
    for v, lst in enumerate(node_graph):
        for j in lst:
            if j != 0:
                anode[v, j] += 1.0
    # bf16 is only exact for integer counts <= 256 (always true for chemical graphs)
    assert amess.max() <= 256.0 and anode.max() <= 256.0, "counts not bf16-exact"
    pool = np.zeros((b_pad, n_pad), np.float32)
    for b, (st, ln) in enumerate(scope):
        pool[b, st:st + ln] = 1.0 / ln
    fmess_idx = np.zeros((m_pad,), np.int32)
    fmess_idx[:M] = np.asarray(fmess, np.int32)
    return (jnp.asarray(amess, jnp.bfloat16), jnp.asarray(anode, jnp.bfloat16),
            jnp.asarray(pool, jnp.float32), jnp.asarray(fmess_idx))


def make_params(keys):
    """Per-branch params.  wi / wh stay at hidden=32 (bf16-cast at stack time);
    only the split readout projections (wo_node, wo_agg) and their bias are
    lane-padded to HPAD so node_h and the per-branch output block are 128-lane
    dense.  Padded columns / bias lanes are zero -> padded output lanes stay 0."""
    it = iter(keys)

    def mat(shape):
        return 0.1 * jax.random.normal(next(it), shape, jnp.float32)

    wi, wh, wo_n, wo_a = (mat((HIDDEN, HIDDEN)) for _ in range(4))
    bi, bh, bo = (mat((1, HIDDEN)) for _ in range(3))

    won = jnp.zeros((HIDDEN, HPAD), jnp.float32).at[:, :HIDDEN].set(wo_n)
    woa = jnp.zeros((HIDDEN, HPAD), jnp.float32).at[:, :HIDDEN].set(wo_a)
    bo_p = jnp.zeros((1, HPAD), jnp.float32).at[:, :HIDDEN].set(bo)
    return wi, wh, won, woa, bi, bh, bo_p


def _pad_to(x, m):
    return ((x + m - 1) // m) * m


# ----------------------------------------------------------------------------
if __name__ == "__main__":
    key = jax.random.PRNGKey(0)
    keys = jax.random.split(key, 16)
    rng = random.Random(0)

    B, BP = 2, 8

    # synthetic junction trees (replace RDKit MolTree / tree_decomp)
    tree_sizes = [5, 7]
    tree_graphs = [(n, [(i, rng.randrange(i)) for i in range(1, n)])
                   for n in tree_sizes]
    fnode_words = [rng.randrange(VOCAB_SIZE) for _ in range(sum(tree_sizes))]

    # synthetic molecular graphs (replace RDKit mol graphs used by MPN)
    mol_sizes = [8, 10]
    mol_graphs = [(n, [(i - 1, i) for i in range(1, n)] + [(0, n - 1)])
                  for n in mol_sizes]

    Nt, Mt, fmess_t, ng_t, mg_t, scope_t = tensorize(tree_graphs)
    Nm, Mm, fmess_m, ng_m, mg_m, scope_m = tensorize(mol_graphs)

    NP = _pad_to(max(Nt, Nm), 16)      # bf16 sublane-tile aligned node rows (shared)
    MP = _pad_to(max(Mt, Mm), 128)     # lane-aligned message rows (lane dim of amess/anode)

    amess_t, anode_t, pool_t, fidx_t = build_dense(Nt, Mt, fmess_t, ng_t, mg_t,
                                                   scope_t, NP, MP, BP)
    amess_m, anode_m, pool_m, fidx_m = build_dense(Nm, Mm, fmess_m, ng_m, mg_m,
                                                   scope_m, NP, MP, BP)

    # ---- node features: tree = embedding lookup, mol = atom features --------
    embedding = 0.1 * jax.random.normal(keys[0], (VOCAB_SIZE, HIDDEN), jnp.float32)
    fnode_t = jnp.zeros((NP, HIDDEN), jnp.float32).at[:Nt].set(
        jnp.take(embedding, jnp.asarray(fnode_words, jnp.int32), axis=0)
    ).astype(jnp.bfloat16)
    fnode_m = jnp.zeros((NP, HIDDEN), jnp.float32).at[:Nm].set(
        0.1 * jax.random.normal(keys[8], (Nm, HIDDEN), jnp.float32)
    ).astype(jnp.bfloat16)

    # fmess = fnode[fmess]: row gather done in the wrapper (see in-kernel TODO above)
    fmess_xt = jnp.take(fnode_t, fidx_t, axis=0)     # (MP, HIDDEN) bf16
    fmess_xm = jnp.take(fnode_m, fidx_m, axis=0)

    tree_params = make_params(keys[1:8])
    mol_params = make_params(keys[9:16])

    bf = lambda x: x.astype(jnp.bfloat16)
    stack = lambda a, b: jnp.stack([a, b], axis=0)

    fnode_s = stack(fnode_t, fnode_m)                # (2, NP, H)   bf16
    fmess_s = stack(fmess_xt, fmess_xm)              # (2, MP, H)   bf16
    amess_s = stack(amess_t, amess_m)                # (2, MP, MP)  bf16
    anode_s = stack(anode_t, anode_m)                # (2, NP, MP)  bf16
    pool_s = stack(pool_t, pool_m)                   # (2, BP, NP)  f32

    (wi_t, wh_t, won_t, woa_t, bi_t, bh_t, bo_t) = tree_params
    (wi_m, wh_m, won_m, woa_m, bi_m, bh_m, bo_m) = mol_params
    wi_s, wh_s, won_s, woa_s = (
        stack(bf(a), bf(b)) for a, b in
        ((wi_t, wi_m), (wh_t, wh_m), (won_t, won_m), (woa_t, woa_m)))
    bi_s, bh_s, bo_s = (
        stack(a, b) for a, b in ((bi_t, bi_m), (bh_t, bh_m), (bo_t, bo_m)))

    # ---- single fused pallas_call over both branches -------------------------
    out_slab = encode_fused(fnode_s, fmess_s, amess_s, anode_s, pool_s,
                            wi_s, wh_s, won_s, woa_s, bi_s, bh_s, bo_s)   # (BP, 2*HPAD)

    # ---- JTNN.forward output: cat([tree_vec, mol_vec], dim=-1) ---------------
    tree_vec = out_slab[:B, :HIDDEN]
    mol_vec = out_slab[:B, HPAD:HPAD + HIDDEN]
    out = jnp.concatenate([tree_vec, mol_vec], axis=-1)
    out = jax.block_until_ready(out)

    assert out.shape == (B, 2 * HIDDEN) and out.dtype == jnp.float32
    assert bool(jnp.all(jnp.isfinite(out)))
    print("KERNEL_OK")
</pallas_src>

<mosaic_0001>
module attributes {stable_mosaic.version = 11 : i64} {
  func.func @_encoder_kernel(%arg0: i32, %arg1: memref<1x32x32xbf16, #tpu.memory_space<vmem>>, %arg2: memref<1x128x32xbf16, #tpu.memory_space<vmem>>, %arg3: memref<1x128x128xbf16, #tpu.memory_space<vmem>>, %arg4: memref<1x32x128xbf16, #tpu.memory_space<vmem>>, %arg5: memref<1x8x32xf32, #tpu.memory_space<vmem>>, %arg6: memref<1x32x32xbf16, #tpu.memory_space<vmem>>, %arg7: memref<1x32x32xbf16, #tpu.memory_space<vmem>>, %arg8: memref<1x32x128xbf16, #tpu.memory_space<vmem>>, %arg9: memref<1x32x128xbf16, #tpu.memory_space<vmem>>, %arg10: memref<1x1x32xf32, #tpu.memory_space<vmem>>, %arg11: memref<1x1x32xf32, #tpu.memory_space<vmem>>, %arg12: memref<1x1x128xf32, #tpu.memory_space<vmem>>, %arg13: memref<8x128xf32, #tpu.memory_space<vmem>>) attributes {dimension_semantics = [#tpu.dimension_semantics<parallel>], iteration_bounds = array<i64: 2>, scalar_prefetch = 0 : i64, scratch_operands = 0 : i64, tpu.core_type = #tpu.core_type<tc>, window_params = [{transform_indices = @transform_0, window_bounds = array<i64: 1, 32, 32>}, {transform_indices = @transform_1, window_bounds = array<i64: 1, 128, 32>}, {transform_indices = @transform_2, window_bounds = array<i64: 1, 128, 128>}, {transform_indices = @transform_3, window_bounds = array<i64: 1, 32, 128>}, {transform_indices = @transform_4, window_bounds = array<i64: 1, 8, 32>}, {transform_indices = @transform_5, window_bounds = array<i64: 1, 32, 32>}, {transform_indices = @transform_6, window_bounds = array<i64: 1, 32, 32>}, {transform_indices = @transform_7, window_bounds = array<i64: 1, 32, 128>}, {transform_indices = @transform_8, window_bounds = array<i64: 1, 32, 128>}, {transform_indices = @transform_9, window_bounds = array<i64: 1, 1, 32>}, {transform_indices = @transform_10, window_bounds = array<i64: 1, 1, 32>}, {transform_indices = @transform_11, window_bounds = array<i64: 1, 1, 128>}, {transform_indices = @transform_12, window_bounds = array<i64: 8, 128>}]} {
    %c0 = arith.constant 0 : index
    %c0_0 = arith.constant 0 : index
    %c0_1 = arith.constant 0 : index
    %0 = vector.load %arg2[%c0, %c0_0, %c0_1] : memref<1x128x32xbf16, #tpu.memory_space<vmem>>, vector<1x128x32xbf16>
    %1 = vector.shape_cast %0 : vector<1x128x32xbf16> to vector<128x32xbf16>
    %c0_2 = arith.constant 0 : index
    %c0_3 = arith.constant 0 : index
    %c0_4 = arith.constant 0 : index
    %2 = vector.load %arg3[%c0_2, %c0_3, %c0_4] : memref<1x128x128xbf16, #tpu.memory_space<vmem>>, vector<1x128x128xbf16>
    %3 = vector.shape_cast %2 : vector<1x128x128xbf16> to vector<128x128xbf16>
    %c0_5 = arith.constant 0 : index
    %c0_6 = arith.constant 0 : index
    %c0_7 = arith.constant 0 : index
    %4 = vector.load %arg6[%c0_5, %c0_6, %c0_7] : memref<1x32x32xbf16, #tpu.memory_space<vmem>>, vector<1x32x32xbf16>
    %5 = vector.shape_cast %4 : vector<1x32x32xbf16> to vector<32x32xbf16>
    %c0_8 = arith.constant 0 : index
    %c0_9 = arith.constant 0 : index
    %c0_10 = arith.constant 0 : index
    %6 = vector.load %arg7[%c0_8, %c0_9, %c0_10] : memref<1x32x32xbf16, #tpu.memory_space<vmem>>, vector<1x32x32xbf16>
    %7 = vector.shape_cast %6 : vector<1x32x32xbf16> to vector<32x32xbf16>
    %c0_11 = arith.constant 0 : index
    %c0_12 = arith.constant 0 : index
    %c0_13 = arith.constant 0 : index
    %8 = vector.load %arg10[%c0_11, %c0_12, %c0_13] : memref<1x1x32xf32, #tpu.memory_space<vmem>>, vector<1x1x32xf32>
    %9 = vector.shape_cast %8 : vector<1x1x32xf32> to vector<1x32xf32>
    %c0_14 = arith.constant 0 : index
    %c0_15 = arith.constant 0 : index
    %c0_16 = arith.constant 0 : index
    %10 = vector.load %arg11[%c0_14, %c0_15, %c0_16] : memref<1x1x32xf32, #tpu.memory_space<vmem>>, vector<1x1x32xf32>
    %11 = vector.shape_cast %10 : vector<1x1x32xf32> to vector<1x32xf32>
    %cst = arith.constant dense<0.000000e+00> : vector<128x32xf32>
    %12 = tpu.matmul %1, %5, %cst {dimension_numbers = #tpu.dot_dimension_numbers<[1], [0], [0], [1], [0, 0, 1, 1], [], []>} : vector<128x32xbf16>, vector<32x32xbf16>, vector<128x32xf32> -> vector<128x32xf32>
    %13 = vector.broadcast %9 : vector<1x32xf32> to vector<128x32xf32>
    %14 = arith.addf %12, %13 : vector<128x32xf32>
    %cst_17 = arith.constant 0.000000e+00 : f32
    %15 = vector.broadcast %cst_17 : f32 to vector<128x32xf32>
    %16 = arith.maximumf %14, %15 : vector<128x32xf32>
    %17 = vector.broadcast %11 : vector<1x32xf32> to vector<128x32xf32>
    %18 = arith.addf %16, %17 : vector<128x32xf32>
    %19 = arith.truncf %16 : vector<128x32xf32> to vector<128x32xbf16>
    %cst_18 = arith.constant dense<0.000000e+00> : vector<128x32xf32>
    %20 = tpu.matmul %3, %19, %cst_18 {dimension_numbers = #tpu.dot_dimension_numbers<[1], [0], [0], [1], [0, 0, 1, 1], [], []>} : vector<128x128xbf16>, vector<128x32xbf16>, vector<128x32xf32> -> vector<128x32xf32>
    %21 = arith.truncf %20 : vector<128x32xf32> to vector<128x32xbf16>
    %cst_19 = arith.constant dense<0.000000e+00> : vector<128x32xf32>
    %22 = tpu.matmul %21, %7, %cst_19 {dimension_numbers = #tpu.dot_dimension_numbers<[1], [0], [0], [1], [0, 0, 1, 1], [], []>} : vector<128x32xbf16>, vector<32x32xbf16>, vector<128x32xf32> -> vector<128x32xf32>
    %23 = arith.addf %18, %22 : vector<128x32xf32>
    %cst_20 = arith.constant 0.000000e+00 : f32
    %24 = vector.broadcast %cst_20 : f32 to vector<128x32xf32>
    %25 = arith.maximumf %23, %24 : vector<128x32xf32>
    %26 = arith.truncf %25 : vector<128x32xf32> to vector<128x32xbf16>
    %cst_21 = arith.constant dense<0.000000e+00> : vector<128x32xf32>
    %27 = tpu.matmul %3, %26, %cst_21 {dimension_numbers = #tpu.dot_dimension_numbers<[1], [0], [0], [1], [0, 0, 1, 1], [], []>} : vector<128x128xbf16>, vector<128x32xbf16>, vector<128x32xf32> -> vector<128x32xf32>
    %28 = arith.truncf %27 : vector<128x32xf32> to vector<128x32xbf16>
    %cst_22 = arith.constant dense<0.000000e+00> : vector<128x32xf32>
    %29 = tpu.matmul %28, %7, %cst_22 {dimension_numbers = #tpu.dot_dimension_numbers<[1], [0], [0], [1], [0, 0, 1, 1], [], []>} : vector<128x32xbf16>, vector<32x32xbf16>, vector<128x32xf32> -> vector<128x32xf32>
    %30 = arith.addf %18, %29 : vector<128x32xf32>
    %cst_23 = arith.constant 0.000000e+00 : f32
    %31 = vector.broadcast %cst_23 : f32 to vector<128x32xf32>
    %32 = arith.maximumf %30, %31 : vector<128x32xf32>
    %c0_24 = arith.constant 0 : index
    %c0_25 = arith.constant 0 : index
    %c0_26 = arith.constant 0 : index
    %33 = vector.load %arg4[%c0_24, %c0_25, %c0_26] : memref<1x32x128xbf16, #tpu.memory_space<vmem>>, vector<1x32x128xbf16>
    %34 = vector.shape_cast %33 : vector<1x32x128xbf16> to vector<32x128xbf16>
    %35 = arith.truncf %32 : vector<128x32xf32> to vector<128x32xbf16>
    %cst_27 = arith.constant dense<0.000000e+00> : vector<32x32xf32>
    %36 = tpu.matmul %34, %35, %cst_27 {dimension_numbers = #tpu.dot_dimension_numbers<[1], [0], [0], [1], [0, 0, 1, 1], [], []>} : vector<32x128xbf16>, vector<128x32xbf16>, vector<32x32xf32> -> vector<32x32xf32>
    %c0_28 = arith.constant 0 : index
    %c0_29 = arith.constant 0 : index
    %c0_30 = arith.constant 0 : index
    %37 = vector.load %arg1[%c0_28, %c0_29, %c0_30] : memref<1x32x32xbf16, #tpu.memory_space<vmem>>, vector<1x32x32xbf16>
    %38 = vector.shape_cast %37 : vector<1x32x32xbf16> to vector<32x32xbf16>
    %c0_31 = arith.constant 0 : index
    %c0_32 = arith.constant 0 : index
    %c0_33 = arith.constant 0 : index
    %39 = vector.load %arg8[%c0_31, %c0_32, %c0_33] : memref<1x32x128xbf16, #tpu.memory_space<vmem>>, vector<1x32x128xbf16>
    %40 = vector.shape_cast %39 : vector<1x32x128xbf16> to vector<32x128xbf16>
    %cst_34 = arith.constant dense<0.000000e+00> : vector<32x128xf32>
    %41 = tpu.matmul %38, %40, %cst_34 {dimension_numbers = #tpu.dot_dimension_numbers<[1], [0], [0], [1], [0, 0, 1, 1], [], []>} : vector<32x32xbf16>, vector<32x128xbf16>, vector<32x128xf32> -> vector<32x128xf32>
    %42 = arith.truncf %36 : vector<32x32xf32> to vector<32x32xbf16>
    %c0_35 = arith.constant 0 : index
    %c0_36 = arith.constant 0 : index
    %c0_37 = arith.constant 0 : index
    %43 = vector.load %arg9[%c0_35, %c0_36, %c0_37] : memref<1x32x128xbf16, #tpu.memory_space<vmem>>, vector<1x32x128xbf16>
    %44 = vector.shape_cast %43 : vector<1x32x128xbf16> to vector<32x128xbf16>
    %cst_38 = arith.constant dense<0.000000e+00> : vector<32x128xf32>
    %45 = tpu.matmul %42, %44, %cst_38 {dimension_numbers = #tpu.dot_dimension_numbers<[1], [0], [0], [1], [0, 0, 1, 1], [], []>} : vector<32x32xbf16>, vector<32x128xbf16>, vector<32x128xf32> -> vector<32x128xf32>
    %46 = arith.addf %41, %45 : vector<32x128xf32>
    %c0_39 = arith.constant 0 : index
    %c0_40 = arith.constant 0 : index
    %c0_41 = arith.constant 0 : index
    %47 = vector.load %arg12[%c0_39, %c0_40, %c0_41] : memref<1x1x128xf32, #tpu.memory_space<vmem>>, vector<1x1x128xf32>
    %48 = vector.shape_cast %47 : vector<1x1x128xf32> to vector<1x128xf32>
    %49 = vector.broadcast %48 : vector<1x128xf32> to vector<32x128xf32>
    %50 = arith.addf %46, %49 : vector<32x128xf32>
    %cst_42 = arith.constant 0.000000e+00 : f32
    %51 = vector.broadcast %cst_42 : f32 to vector<32x128xf32>
    %52 = arith.maximumf %50, %51 : vector<32x128xf32>
    %c0_43 = arith.constant 0 : index
    %c0_44 = arith.constant 0 : index
    %c0_45 = arith.constant 0 : index
    %53 = vector.load %arg5[%c0_43, %c0_44, %c0_45] : memref<1x8x32xf32, #tpu.memory_space<vmem>>, vector<1x8x32xf32>
    %54 = vector.shape_cast %53 : vector<1x8x32xf32> to vector<8x32xf32>
    %cst_46 = arith.constant dense<0.000000e+00> : vector<8x128xf32>
    %55 = tpu.matmul %54, %52, %cst_46 {dimension_numbers = #tpu.dot_dimension_numbers<[1], [0], [0], [1], [0, 0, 1, 1], [], []>} : vector<8x32xf32>, vector<32x128xf32>, vector<8x128xf32> -> vector<8x128xf32>
    %c0_47 = arith.constant 0 : index
    %c0_48 = arith.constant 0 : index
    %56 = vector.load %arg13[%c0_47, %c0_48] : memref<8x128xf32, #tpu.memory_space<vmem>>, vector<8x128xf32>
    tpu.vector_store %arg13[%c0_47, %c0_48], %55 {strides = array<i32>} : memref<8x128xf32, #tpu.memory_space<vmem>>, vector<8x128xf32>,
    return
  }
  func.func @transform_0(%arg0: i32) -> (i32, i32, i32) {
    %c0_i32 = arith.constant 0 : i32
    %c0_i32_0 = arith.constant 0 : i32
    %c0_i32_1 = arith.constant 0 : i32
    return %arg0, %c0_i32, %c0_i32_0 : i32, i32, i32
  }
  func.func @transform_1(%arg0: i32) -> (i32, i32, i32) {
    %c0_i32 = arith.constant 0 : i32
    %c0_i32_0 = arith.constant 0 : i32
    %c0_i32_1 = arith.constant 0 : i32
    return %arg0, %c0_i32, %c0_i32_0 : i32, i32, i32
  }
  func.func @transform_2(%arg0: i32) -> (i32, i32, i32) {
    %c0_i32 = arith.constant 0 : i32
    %c0_i32_0 = arith.constant 0 : i32
    %c0_i32_1 = arith.constant 0 : i32
    return %arg0, %c0_i32, %c0_i32_0 : i32, i32, i32
  }
  func.func @transform_3(%arg0: i32) -> (i32, i32, i32) {
    %c0_i32 = arith.constant 0 : i32
    %c0_i32_0 = arith.constant 0 : i32
    %c0_i32_1 = arith.constant 0 : i32
    return %arg0, %c0_i32, %c0_i32_0 : i32, i32, i32
  }
  func.func @transform_4(%arg0: i32) -> (i32, i32, i32) {
    %c0_i32 = arith.constant 0 : i32
    %c0_i32_0 = arith.constant 0 : i32
    %c0_i32_1 = arith.constant 0 : i32
    return %arg0, %c0_i32, %c0_i32_0 : i32, i32, i32
  }
  func.func @transform_5(%arg0: i32) -> (i32, i32, i32) {
    %c0_i32 = arith.constant 0 : i32
    %c0_i32_0 = arith.constant 0 : i32
    %c0_i32_1 = arith.constant 0 : i32
    return %arg0, %c0_i32, %c0_i32_0 : i32, i32, i32
  }
  func.func @transform_6(%arg0: i32) -> (i32, i32, i32) {
    %c0_i32 = arith.constant 0 : i32
    %c0_i32_0 = arith.constant 0 : i32
    %c0_i32_1 = arith.constant 0 : i32
    return %arg0, %c0_i32, %c0_i32_0 : i32, i32, i32
  }
  func.func @transform_7(%arg0: i32) -> (i32, i32, i32) {
    %c0_i32 = arith.constant 0 : i32
    %c0_i32_0 = arith.constant 0 : i32
    %c0_i32_1 = arith.constant 0 : i32
    return %arg0, %c0_i32, %c0_i32_0 : i32, i32, i32
  }
  func.func @transform_8(%arg0: i32) -> (i32, i32, i32) {
    %c0_i32 = arith.constant 0 : i32
    %c0_i32_0 = arith.constant 0 : i32
    %c0_i32_1 = arith.constant 0 : i32
    return %arg0, %c0_i32, %c0_i32_0 : i32, i32, i32
  }
  func.func @transform_9(%arg0: i32) -> (i32, i32, i32) {
    %c0_i32 = arith.constant 0 : i32
    %c0_i32_0 = arith.constant 0 : i32
    %c0_i32_1 = arith.constant 0 : i32
    return %arg0, %c0_i32, %c0_i32_0 : i32, i32, i32
  }
  func.func @transform_10(%arg0: i32) -> (i32, i32, i32) {
    %c0_i32 = arith.constant 0 : i32
    %c0_i32_0 = arith.constant 0 : i32
    %c0_i32_1 = arith.constant 0 : i32
    return %arg0, %c0_i32, %c0_i32_0 : i32, i32, i32
  }
  func.func @transform_11(%arg0: i32) -> (i32, i32, i32) {
    %c0_i32 = arith.constant 0 : i32
    %c0_i32_0 = arith.constant 0 : i32
    %c0_i32_1 = arith.constant 0 : i32
    return %arg0, %c0_i32, %c0_i32_0 : i32, i32, i32
  }
  func.func @transform_12(%arg0: i32) -> (i32, i32) {
    %c0_i32 = arith.constant 0 : i32
    %c0_i32_0 = arith.constant 0 : i32
    return %c0_i32, %arg0 : i32, i32
  }
}

</mosaic_0001>

<llo_original>
// kernel: tpu_custom_call.1
$region0: #{tpu_custom_call.1}
  #allocation0 [shape = 'u32[]', space=smem, size = 0x4, offset = 0x4, fixed_abs, tag = 'smem constant byte address 0x4 - core index']
  #allocation1 [shape = 'u32[144,128]{1,0:T(1,128)}', space=vmem, size = 0x12000, scoped, tag = 'internal scratch']
  %s0 = inlined_call_operand.vmem [shape: bf16[2,32,32], index: 0, kind: input, shape index: {}]
  %s1 = inlined_call_operand.vmem [shape: bf16[2,128,32], index: 1, kind: input, shape index: {}]
  %s2 = inlined_call_operand.vmem [shape: bf16[2,128,128], index: 2, kind: input, shape index: {}]
  %s3 = inlined_call_operand.hbm [shape: bf16[2,32,128], index: 3, kind: input, shape index: {}]
  %s4 = inlined_call_operand.hbm [shape: f32[2,8,32], index: 4, kind: input, shape index: {}]
  %s5 = inlined_call_operand.hbm [shape: bf16[2,32,32], index: 5, kind: input, shape index: {}]
  %s6 = inlined_call_operand.hbm [shape: bf16[2,32,32], index: 6, kind: input, shape index: {}]
  %s7 = inlined_call_operand.hbm [shape: bf16[2,32,128], index: 7, kind: input, shape index: {}]
  %s8 = inlined_call_operand.hbm [shape: bf16[2,32,128], index: 8, kind: input, shape index: {}]
  %s9 = inlined_call_operand.vmem [shape: f32[2,1,32], index: 9, kind: input, shape index: {}]
  %s10 = inlined_call_operand.vmem [shape: f32[2,1,32], index: 10, kind: input, shape index: {}]
  %s11 = inlined_call_operand.vmem [shape: f32[2,1,128], index: 11, kind: input, shape index: {}]
  %s12 = inlined_call_operand.hbm [shape: f32[8,256], index: 12, kind: output, shape index: {}]
  %s13 = sld [smem:[#allocation0]]
  $region105: #{tpu_custom_call.1} parent=0
    _
  %s15 = ssub.s32 1, %s13
  %s16 = scalar_select 0, %s15, %s13
  $region1: #{tpu_custom_call.1} parent=0
    #allocation2 [shape = 'u8[16384]{0}', space=vmem, size = 0x4000, scoped, tag = 'input window, operand 3']
    #allocation3 [shape = 's32[2]{0}', space=sflag, size = 0x8, scoped, tag = 'scoped memory for tpu_custom_call.1']
    #allocation4 [shape = 's32[2]{0}', space=sflag, size = 0x8, scoped, tag = 'scoped memory for tpu_custom_call.1']
    #allocation5 [shape = 'u8[8192]{0}', space=vmem, size = 0x2000, scoped, tag = 'input window, operand 4']
    #allocation6 [shape = 's32[2]{0}', space=sflag, size = 0x8, scoped, tag = 'scoped memory for tpu_custom_call.1']
    #allocation7 [shape = 'u8[16384]{0}', space=vmem, size = 0x4000, scoped, tag = 'input window, operand 5']
    #allocation8 [shape = 'u8[16384]{0}', space=vmem, size = 0x4000, scoped, tag = 'input window, operand 6']
    #allocation9 [shape = 's32[2]{0}', space=sflag, size = 0x8, scoped, tag = 'scoped memory for tpu_custom_call.1']
    #allocation10 [shape = 'u8[16384]{0}', space=vmem, size = 0x4000, scoped, tag = 'input window, operand 7']
    #allocation11 [shape = 'u8[16384]{0}', space=vmem, size = 0x4000, scoped, tag = 'input window, operand 8']
    #allocation12 [shape = 's32[2]{0}', space=sflag, size = 0x8, scoped, tag = 'scoped memory for tpu_custom_call.1']
    #allocation13 [shape = 'u8[8192]{0}', space=vmem, size = 0x2000, scoped, tag = 'output window, operand 0']
    %17 = vsyncpa [#allocation3], 0
    %s18 = scalar_lea.sflag [#allocation3], 1
    %19 = vsyncpa %s18, 0
    %20 = vsyncpa [#allocation6], 0
    %s21 = scalar_lea.sflag [#allocation6], 1
    %22 = vsyncpa %s21, 0
    %23 = vsyncpa [#allocation9], 0
    %s24 = scalar_lea.sflag [#allocation9], 1
    %25 = vsyncpa %s24, 0
    %26 = vsyncpa [#allocation12], 0
    %s27 = scalar_lea.sflag [#allocation12], 1
    %28 = vsyncpa %s27, 0
    %29 = vsyncpa [#allocation4], 0
    %s30 = scalar_lea.sflag [#allocation4], 1
    %31 = vsyncpa %s30, 0
    loop: start=0, step=1, limit=4
    $region2: #{tpu_custom_call.1} parent=1 // loop_pre_header
      _
    $region3: #{tpu_custom_call.1} parent=1 // loop_header
      %s33 = sphi 0, %s37
      %p34 = scmp.ge.s32.totalorder %s33, 4
      %s43 = sphi 0, %s45
      %s46 = sphi 0, %s43
      %s47 = sphi 0, %s46
      %s63 = sphi 0, %s47
      %s69 = sphi 0, %s71
      %s72 = sphi 0, %s69
      %s73 = sphi 0, %s72
      %s89 = sphi 0, %s73
      %s95 = sphi 0, %s97
      %s98 = sphi 0, %s95
      %s99 = sphi 0, %s98
      %s115 = sphi 0, %s99
      %s121 = sphi 0, %s123
      %s124 = sphi 0, %s121
      %s125 = sphi 0, %s124
      %s141 = sphi 0, %s125
      %s147 = sphi 0, %s149
      %s150 = sphi 0, %s147
      %s151 = sphi 0, %s150
      %s167 = sphi 0, %s151
      %s173 = sphi 0, %s175
      %s176 = sphi 0, %s173
      %s177 = sphi 0, %s176
      %s193 = sphi 0, %s177
      %s199 = sphi 0, %s201
      %s202 = sphi 0, %s199
      %s203 = sphi 0, %s202
      %s219 = sphi 0, %s203
      %s225 = sphi 0, %s227
      %s228 = sphi 0, %s225
      %s229 = sphi 0, %s228
      %s245 = sphi 0, %s229
      %s251 = sphi 0, %s253
      %s254 = sphi 0, %s251
      %s255 = sphi 0, %s254
      %s271 = sphi 0, %s255
      %s277 = sphi 0, %s279
      %s280 = sphi 0, %s277
      %s281 = sphi 0, %s280
      %s297 = sphi 0, %s281
      %s303 = sphi 0, %s305
      %s306 = sphi 0, %s303
      %s307 = sphi 0, %s306
      %s323 = sphi 0, %s307
      %s329 = sphi 0, %s331
      %s332 = sphi 0, %s329
      %s333 = sphi 0, %s332
      %s349 = sphi 0, %s333
      %s355 = sphi 0, %s357
      %s358 = sphi 0, %s355
      %s359 = sphi 0, %s358
      %s375 = sphi 0, %s359
    $region4: #{tpu_custom_call.1} parent=1 // loop_header_branch
      %36 = sbr.rel (%p34) target = $region8
    $region5: #{tpu_custom_call.1} parent=1 // loop_body
      %s38 = ssub.s32 %s33, 1
      %s39 = ssub.s32 %s33, 2
      %s40 = sadd.s32 %s33, 1
      %s41 = ssub.s32 %s33, %s40
      %p42 = scmp.eq.s32.totalorder %s41, 0
      %s44 = sadd.s32 %s43, 1
      %s45 = scalar_select %p42, %s43, %s44
      %p48 = pneg %p42
      %p49 = scmp.eq.s32.totalorder %s33, 1
      %p50 = por %p48, %p49
      %p51 = scmp.ne.s32.totalorder %s43, %s46
      %p52 = scmp.eq.s32.totalorder %s33, 0
      %p53 = por %p51, %p52
      %p54 = scmp.ne.s32.totalorder %s43, %s46
      %p55 = scmp.eq.s32.totalorder %s38, 1
      %p56 = por %p54, %p55
      %p57 = scmp.ne.s32.totalorder %s46, %s47
      %p58 = scmp.eq.s32.totalorder %s38, 0
      %p59 = por %p57, %p58
      %p60 = scmp.ne.s32.totalorder %s46, %s47
      %p61 = scmp.eq.s32.totalorder %s39, 1
      %p62 = por %p60, %p61
      %p64 = scmp.ne.s32.totalorder %s47, %s63
      %p65 = scmp.eq.s32.totalorder %s39, 0
      %p66 = por %p64, %p65
      %s67 = ssub.s32 %s33, %s40
      %p68 = scmp.eq.s32.totalorder %s67, 0
      %s70 = sadd.s32 %s69, 1
      %s71 = scalar_select %p68, %s69, %s70
      %p74 = pneg %p68
      %p75 = scmp.eq.s32.totalorder %s33, 1
      %p76 = por %p74, %p75
      %p77 = scmp.ne.s32.totalorder %s69, %s72
      %p78 = scmp.eq.s32.totalorder %s33, 0
      %p79 = por %p77, %p78
      %p80 = scmp.ne.s32.totalorder %s69, %s72
      %p81 = scmp.eq.s32.totalorder %s38, 1
      %p82 = por %p80, %p81
      %p83 = scmp.ne.s32.totalorder %s72, %s73
      %p84 = scmp.eq.s32.totalorder %s38, 0
      %p85 = por %p83, %p84
      %p86 = scmp.ne.s32.totalorder %s72, %s73
      %p87 = scmp.eq.s32.totalorder %s39, 1
      %p88 = por %p86, %p87
      %p90 = scmp.ne.s32.totalorder %s73, %s89
      %p91 = scmp.eq.s32.totalorder %s39, 0
      %p92 = por %p90, %p91
      %s93 = ssub.s32 %s33, %s40
      %p94 = scmp.eq.s32.totalorder %s93, 0
      %s96 = sadd.s32 %s95, 1
      %s97 = scalar_select %p94, %s95, %s96
      %p100 = pneg %p94
      %p101 = scmp.eq.s32.totalorder %s33, 1
      %p102 = por %p100, %p101
      %p103 = scmp.ne.s32.totalorder %s95, %s98
      %p104 = scmp.eq.s32.totalorder %s33, 0
      %p105 = por %p103, %p104
      %p106 = scmp.ne.s32.totalorder %s95, %s98
      %p107 = scmp.eq.s32.totalorder %s38, 1
      %p108 = por %p106, %p107
      %p109 = scmp.ne.s32.totalorder %s98, %s99
      %p110 = scmp.eq.s32.totalorder %s38, 0
      %p111 = por %p109, %p110
      %p112 = scmp.ne.s32.totalorder %s98, %s99
      %p113 = scmp.eq.s32.totalorder %s39, 1
      %p114 = por %p112, %p113
      %p116 = scmp.ne.s32.totalorder %s99, %s115
      %p117 = scmp.eq.s32.totalorder %s39, 0
      %p118 = por %p116, %p117
      %s119 = ssub.s32 %s33, %s40
      %p120 = scmp.eq.s32.totalorder %s119, 0
      %s122 = sadd.s32 %s121, 1
      %s123 = scalar_select %p120, %s121, %s122
      %p126 = pneg %p120
      %p127 = scmp.eq.s32.totalorder %s33, 1
      %p128 = por %p126, %p127
      %p129 = scmp.ne.s32.totalorder %s121, %s124
      %p130 = scmp.eq.s32.totalorder %s33, 0
      %p131 = por %p129, %p130
      %p132 = scmp.ne.s32.totalorder %s121, %s124
      %p133 = scmp.eq.s32.totalorder %s38, 1
      %p134 = por %p132, %p133
      %p135 = scmp.ne.s32.totalorder %s124, %s125
      %p136 = scmp.eq.s32.totalorder %s38, 0
      %p137 = por %p135, %p136
      %p138 = scmp.ne.s32.totalorder %s124, %s125
      %p139 = scmp.eq.s32.totalorder %s39, 1
      %p140 = por %p138, %p139
      %p142 = scmp.ne.s32.totalorder %s125, %s141
      %p143 = scmp.eq.s32.totalorder %s39, 0
      %p144 = por %p142, %p143
      %s145 = ssub.s32 %s33, %s40
      %p146 = scmp.eq.s32.totalorder %s145, 0
      %s148 = sadd.s32 %s147, 1
      %s149 = scalar_select %p146, %s147, %s148
      %p152 = pneg %p146
      %p153 = scmp.eq.s32.totalorder %s33, 1
      %p154 = por %p152, %p153
      %p155 = scmp.ne.s32.totalorder %s147, %s150
      %p156 = scmp.eq.s32.totalorder %s33, 0
      %p157 = por %p155, %p156
      %p158 = scmp.ne.s32.totalorder %s147, %s150
      %p159 = scmp.eq.s32.totalorder %s38, 1
      %p160 = por %p158, %p159
      %p161 = scmp.ne.s32.totalorder %s150, %s151
      %p162 = scmp.eq.s32.totalorder %s38, 0
      %p163 = por %p161, %p162
      %p164 = scmp.ne.s32.totalorder %s150, %s151
      %p165 = scmp.eq.s32.totalorder %s39, 1
      %p166 = por %p164, %p165
      %p168 = scmp.ne.s32.totalorder %s151, %s167
      %p169 = scmp.eq.s32.totalorder %s39, 0
      %p170 = por %p168, %p169
      %s171 = ssub.s32 %s33, %s40
      %p172 = scmp.eq.s32.totalorder %s171, 0
      %s174 = sadd.s32 %s173, 1
      %s175 = scalar_select %p172, %s173, %s174
      %p178 = pneg %p172
      %p179 = scmp.eq.s32.totalorder %s33, 1
      %p180 = por %p178, %p179
      %p181 = scmp.ne.s32.totalorder %s173, %s176
      %p182 = scmp.eq.s32.totalorder %s33, 0
      %p183 = por %p181, %p182
      %p184 = scmp.ne.s32.totalorder %s173, %s176
      %p185 = scmp.eq.s32.totalorder %s38, 1
      %p186 = por %p184, %p185
      %p187 = scmp.ne.s32.totalorder %s176, %s177
      %p188 = scmp.eq.s32.totalorder %s38, 0
      %p189 = por %p187, %p188
      %p190 = scmp.ne.s32.totalorder %s176, %s177
      %p191 = scmp.eq.s32.totalorder %s39, 1
      %p192 = por %p190, %p191
      %p194 = scmp.ne.s32.totalorder %s177, %s193
      %p195 = scmp.eq.s32.totalorder %s39, 0
      %p196 = por %p194, %p195
      %s197 = ssub.s32 %s33, %s40
      %p198 = scmp.eq.s32.totalorder %s197, 0
      %s200 = sadd.s32 %s199, 1
      %s201 = scalar_select %p198, %s199, %s200
      %p204 = pneg %p198
      %p205 = scmp.eq.s32.totalorder %s33, 1
      %p206 = por %p204, %p205
      %p207 = scmp.ne.s32.totalorder %s199, %s202
      %p208 = scmp.eq.s32.totalorder %s33, 0
      %p209 = por %p207, %p208
      %p210 = scmp.ne.s32.totalorder %s199, %s202
      %p211 = scmp.eq.s32.totalorder %s38, 1
      %p212 = por %p210, %p211
      %p213 = scmp.ne.s32.totalorder %s202, %s203
      %p214 = scmp.eq.s32.totalorder %s38, 0
      %p215 = por %p213, %p214
      %p216 = scmp.ne.s32.totalorder %s202, %s203
      %p217 = scmp.eq.s32.totalorder %s39, 1
      %p218 = por %p216, %p217
      %p220 = scmp.ne.s32.totalorder %s203, %s219
      %p221 = scmp.eq.s32.totalorder %s39, 0
      %p222 = por %p220, %p221
      %s223 = ssub.s32 %s33, %s40
      %p224 = scmp.eq.s32.totalorder %s223, 0
      %s226 = sadd.s32 %s225, 1
      %s227 = scalar_select %p224, %s225, %s226
      %p230 = pneg %p224
      %p231 = scmp.eq.s32.totalorder %s33, 1
      %p232 = por %p230, %p231
      %p233 = scmp.ne.s32.totalorder %s225, %s228
      %p234 = scmp.eq.s32.totalorder %s33, 0
      %p235 = por %p233, %p234
      %p236 = scmp.ne.s32.totalorder %s225, %s228
      %p237 = scmp.eq.s32.totalorder %s38, 1
      %p238 = por %p236, %p237
      %p239 = scmp.ne.s32.totalorder %s228, %s229
      %p240 = scmp.eq.s32.totalorder %s38, 0
      %p241 = por %p239, %p240
      %p242 = scmp.ne.s32.totalorder %s228, %s229
      %p243 = scmp.eq.s32.totalorder %s39, 1
      %p244 = por %p242, %p243
      %p246 = scmp.ne.s32.totalorder %s229, %s245
      %p247 = scmp.eq.s32.totalorder %s39, 0
      %p248 = por %p246, %p247
      %s249 = ssub.s32 %s33, %s40
      %p250 = scmp.eq.s32.totalorder %s249, 0
      %s252 = sadd.s32 %s251, 1
      %s253 = scalar_select %p250, %s251, %s252
      %p256 = pneg %p250
      %p257 = scmp.eq.s32.totalorder %s33, 1
      %p258 = por %p256, %p257
      %p259 = scmp.ne.s32.totalorder %s251, %s254
      %p260 = scmp.eq.s32.totalorder %s33, 0
      %p261 = por %p259, %p260
      %p262 = scmp.ne.s32.totalorder %s251, %s254
      %p263 = scmp.eq.s32.totalorder %s38, 1
      %p264 = por %p262, %p263
      %p265 = scmp.ne.s32.totalorder %s254, %s255
      %p266 = scmp.eq.s32.totalorder %s38, 0
      %p267 = por %p265, %p266
      %p268 = scmp.ne.s32.totalorder %s254, %s255
      %p269 = scmp.eq.s32.totalorder %s39, 1
      %p270 = por %p268, %p269
      %p272 = scmp.ne.s32.totalorder %s255, %s271
      %p273 = scmp.eq.s32.totalorder %s39, 0
      %p274 = por %p272, %p273
      %s275 = ssub.s32 %s33, %s40
      %p276 = scmp.eq.s32.totalorder %s275, 0
      %s278 = sadd.s32 %s277, 1
      %s279 = scalar_select %p276, %s277, %s278
      %p282 = pneg %p276
      %p283 = scmp.eq.s32.totalorder %s33, 1
      %p284 = por %p282, %p283
      %p285 = scmp.ne.s32.totalorder %s277, %s280
      %p286 = scmp.eq.s32.totalorder %s33, 0
      %p287 = por %p285, %p286
      %p288 = scmp.ne.s32.totalorder %s277, %s280
      %p289 = scmp.eq.s32.totalorder %s38, 1
      %p290 = por %p288, %p289
      %p291 = scmp.ne.s32.totalorder %s280, %s281
      %p292 = scmp.eq.s32.totalorder %s38, 0
      %p293 = por %p291, %p292
      %p294 = scmp.ne.s32.totalorder %s280, %s281
      %p295 = scmp.eq.s32.totalorder %s39, 1
      %p296 = por %p294, %p295
      %p298 = scmp.ne.s32.totalorder %s281, %s297
      %p299 = scmp.eq.s32.totalorder %s39, 0
      %p300 = por %p298, %p299
      %s301 = ssub.s32 %s33, %s40
      %p302 = scmp.eq.s32.totalorder %s301, 0
      %s304 = sadd.s32 %s303, 1
      %s305 = scalar_select %p302, %s303, %s304
      %p308 = pneg %p302
      %p309 = scmp.eq.s32.totalorder %s33, 1
      %p310 = por %p308, %p309
      %p311 = scmp.ne.s32.totalorder %s303, %s306
      %p312 = scmp.eq.s32.totalorder %s33, 0
      %p313 = por %p311, %p312
      %p314 = scmp.ne.s32.totalorder %s303, %s306
      %p315 = scmp.eq.s32.totalorder %s38, 1
      %p316 = por %p314, %p315
      %p317 = scmp.ne.s32.totalorder %s306, %s307
      %p318 = scmp.eq.s32.totalorder %s38, 0
      %p319 = por %p317, %p318
      %p320 = scmp.ne.s32.totalorder %s306, %s307
      %p321 = scmp.eq.s32.totalorder %s39, 1
      %p322 = por %p320, %p321
      %p324 = scmp.ne.s32.totalorder %s307, %s323
      %p325 = scmp.eq.s32.totalorder %s39, 0
      %p326 = por %p324, %p325
      %s327 = ssub.s32 %s33, %s40
      %p328 = scmp.eq.s32.totalorder %s327, 0
      %s330 = sadd.s32 %s329, 1
      %s331 = scalar_select %p328, %s329, %s330
      %p334 = pneg %p328
      %p335 = scmp.eq.s32.totalorder %s33, 1
      %p336 = por %p334, %p335
      %p337 = scmp.ne.s32.totalorder %s329, %s332
      %p338 = scmp.eq.s32.totalorder %s33, 0
      %p339 = por %p337, %p338
      %p340 = scmp.ne.s32.totalorder %s329, %s332
      %p341 = scmp.eq.s32.totalorder %s38, 1
      %p342 = por %p340, %p341
      %p343 = scmp.ne.s32.totalorder %s332, %s333
      %p344 = scmp.eq.s32.totalorder %s38, 0
      %p345 = por %p343, %p344
      %p346 = scmp.ne.s32.totalorder %s332, %s333
      %p347 = scmp.eq.s32.totalorder %s39, 1
      %p348 = por %p346, %p347
      %p350 = scmp.ne.s32.totalorder %s333, %s349
      %p351 = scmp.eq.s32.totalorder %s39, 0
      %p352 = por %p350, %p351
      %s353 = ssub.s32 %s33, %s40
      %p354 = scmp.eq.s32.totalorder %s353, 0
      %s356 = sadd.s32 %s355, 1
      %s357 = scalar_select %p354, %s355, %s356
      %p360 = pneg %p354
      %p361 = scmp.eq.s32.totalorder %s33, 1
      %p362 = por %p360, %p361
      %p363 = scmp.ne.s32.totalorder %s355, %s358
      %p364 = scmp.eq.s32.totalorder %s33, 0
      %p365 = por %p363, %p364
      %p366 = scmp.ne.s32.totalorder %s355, %s358
      %p367 = scmp.eq.s32.totalorder %s38, 1
      %p368 = por %p366, %p367
      %p369 = scmp.ne.s32.totalorder %s358, %s359
      %p370 = scmp.eq.s32.totalorder %s38, 0
      %p371 = por %p369, %p370
      %p372 = scmp.ne.s32.totalorder %s358, %s359
      %p373 = scmp.eq.s32.totalorder %s39, 1
      %p374 = por %p372, %p373
      %p376 = scmp.ne.s32.totalorder %s359, %s375
      %p377 = scmp.eq.s32.totalorder %s39, 0
      %p378 = por %p376, %p377
      %p379 = scmp.le.s32.totalorder 1, %s33
      %p380 = scmp.lt.s32.totalorder %s33, 3
      %p381 = pnand %p379, %p380
      %p382 = pneg %p381
      // Predicated region
      $region9: #{tpu_custom_call.1} parent=5 // pred_check
        _
      $region10: #{tpu_custom_call.1} parent=5 // pred_check_branch
        %384 = sbr.rel (%p381) target = $region12
      $region11: #{tpu_custom_call.1} parent=5 // pred_region
        %s385 = ssub.s32 %s33, 1
      $region12: #{tpu_custom_call.1} parent=5 // pred_fallthru
        _
      %p386 = scmp.lt.s32.totalorder %s33, 2
      // Predicated region
      $region13: #{tpu_custom_call.1} parent=5 // pred_check
        %p387 = pneg %p386
      $region14: #{tpu_custom_call.1} parent=5 // pred_check_branch
        %389 = sbr.rel (%p387) target = $region16
      $region15: #{tpu_custom_call.1} parent=5 // pred_region
        // Predicated region
        $region17: #{tpu_custom_call.1} parent=15 // pred_check
          %p390 = pneg %p53
        $region18: #{tpu_custom_call.1} parent=15 // pred_check_branch
          %392 = sbr.rel (%p390) target = $region20
        $region19: #{tpu_custom_call.1} parent=15 // pred_region
          %p393 = scmp.lt.s32.totalorder %s33, 1
          %s394 = scalar_select %p393, %s33, 1
          %s395 = smul.addr %s394, 4
          %s396 = smul.addr %s395, 4
          %s397 = scalar_lea.vmem %s0, %s396
        $region20: #{tpu_custom_call.1} parent=15 // pred_fallthru
          _
        // Predicated region
        $region21: #{tpu_custom_call.1} parent=15 // pred_check
          %p398 = pneg %p79
        $region22: #{tpu_custom_call.1} parent=15 // pred_check_branch
          %400 = sbr.rel (%p398) target = $region24
        $region23: #{tpu_custom_call.1} parent=15 // pred_region
          %p401 = scmp.lt.s32.totalorder %s33, 1
          %s402 = scalar_select %p401, %s33, 1
          %s403 = smul.addr %s402, 16
          %s404 = smul.addr %s403, 4
          %s405 = scalar_lea.vmem %s1, %s404
        $region24: #{tpu_custom_call.1} parent=15 // pred_fallthru
          _
        // Predicated region
        $region25: #{tpu_custom_call.1} parent=15 // pred_check
          %p406 = pneg %p105
        $region26: #{tpu_custom_call.1} parent=15 // pred_check_branch
          %408 = sbr.rel (%p406) target = $region28
        $region27: #{tpu_custom_call.1} parent=15 // pred_region
          %p409 = scmp.lt.s32.totalorder %s33, 1
          %s410 = scalar_select %p409, %s33, 1
          %s411 = smul.addr %s410, 16
          %s412 = smul.addr %s411, 4
          %s413 = scalar_lea.vmem %s2, %s412
        $region28: #{tpu_custom_call.1} parent=15 // pred_fallthru
          _
        // Predicated region
        $region29: #{tpu_custom_call.1} parent=15 // pred_check
          %p414 = pneg %p131
        $region30: #{tpu_custom_call.1} parent=15 // pred_check_branch
          %416 = sbr.rel (%p414) target = $region32
        $region31: #{tpu_custom_call.1} parent=15 // pred_region
          %s417 = sand.u32 %s121, 1
          %s418 = scalar_lea.sflag [#allocation3], %s417
          %s419 = sand.u32 %s121, 1
          %s420 = smul.addr %s419, 16
          %s421 = scalar_lea.vmem [#allocation2], %s420
          %s423 = ssub.s32 256, 256
          %424 = vsyncadd %s418, %s423
          %s425 = smul.addr %s33, 4
          %s426 = smul.addr %s425, 64
          %s427 = scalar_lea.hbm %s3, %s426
          %s428 = sshll.u32 %s421, 4
          %s429 = int_to_ptr.vmem [resolvable:$true] %s428
          %434 = dma.hbm_to_vmem [thread:$0]  %s427, 256, %s429, %s418, 64, 64, 4
        $region32: #{tpu_custom_call.1} parent=15 // pred_fallthru
          _
        // Predicated region
        $region33: #{tpu_custom_call.1} parent=15 // pred_check
          %p435 = pneg %p157
        $region34: #{tpu_custom_call.1} parent=15 // pred_check_branch
          %437 = sbr.rel (%p435) target = $region36
        $region35: #{tpu_custom_call.1} parent=15 // pred_region
          %s438 = sand.u32 %s33, 1
          %s439 = scalar_lea.sflag [#allocation6], %s438
          %s440 = sand.u32 %s147, 1
          %s441 = smul.addr %s440, 8
          %s442 = scalar_lea.vmem [#allocation5], %s441
          %s444 = ssub.s32 128, 128
          %445 = vsyncadd %s439, %s444
          %s446 = smul.addr %s33, 128
          %s447 = scalar_lea.hbm %s4, %s446
          %s449 = sshll.u32 %s442, 4
          %s450 = int_to_ptr.vmem [resolvable:$true] %s449
          %452 = dma.hbm_to_vmem [thread:$0]  %s447, 128, %s450, %s439
        $region36: #{tpu_custom_call.1} parent=15 // pred_fallthru
          _
        // Predicated region
        $region37: #{tpu_custom_call.1} parent=15 // pred_check
          %p453 = pneg %p183
        $region38: #{tpu_custom_call.1} parent=15 // pred_check_branch
          %455 = sbr.rel (%p453) target = $region40
        $region39: #{tpu_custom_call.1} parent=15 // pred_region
          %s456 = sand.u32 %s33, 1
          %s457 = scalar_lea.sflag [#allocation6], %s456
          %s458 = sand.u32 %s173, 1
          %s459 = smul.addr %s458, 16
          %s460 = scalar_lea.vmem [#allocation7], %s459
          %s462 = ssub.s32 256, 256
          %463 = vsyncadd %s457, %s462
          %s464 = smul.addr %s33, 4
          %s465 = smul.addr %s464, 64
          %s466 = scalar_lea.hbm %s5, %s465
          %s467 = sshll.u32 %s460, 4
          %s468 = int_to_ptr.vmem [resolvable:$true] %s467
          %473 = dma.hbm_to_vmem [thread:$0]  %s466, 256, %s468, %s457, 64, 64, 4
        $region40: #{tpu_custom_call.1} parent=15 // pred_fallthru
          _
        // Predicated region
        $region41: #{tpu_custom_call.1} parent=15 // pred_check
          %p474 = pneg %p209
        $region42: #{tpu_custom_call.1} parent=15 // pred_check_branch
          %476 = sbr.rel (%p474) target = $region44
        $region43: #{tpu_custom_call.1} parent=15 // pred_region
          %s477 = sand.u32 %s33, 1
          %s478 = scalar_lea.sflag [#allocation9], %s477
          %s479 = sand.u32 %s199, 1
          %s480 = smul.addr %s479, 16
          %s481 = scalar_lea.vmem [#allocation8], %s480
          %s483 = ssub.s32 256, 256
          %484 = vsyncadd %s478, %s483
          %s485 = smul.addr %s33, 4
          %s486 = smul.addr %s485, 64
          %s487 = scalar_lea.hbm %s6, %s486
          %s488 = sshll.u32 %s481, 4
          %s489 = int_to_ptr.vmem [resolvable:$true] %s488
          %494 = dma.hbm_to_vmem [thread:$0]  %s487, 256, %s489, %s478, 64, 64, 4
        $region44: #{tpu_custom_call.1} parent=15 // pred_fallthru
          _
        // Predicated region
        $region45: #{tpu_custom_call.1} parent=15 // pred_check
          %p495 = pneg %p235
        $region46: #{tpu_custom_call.1} parent=15 // pred_check_branch
          %497 = sbr.rel (%p495) target = $region48
        $region47: #{tpu_custom_call.1} parent=15 // pred_region
          %s498 = sand.u32 %s33, 1
          %s499 = scalar_lea.sflag [#allocation9], %s498
          %s500 = sand.u32 %s225, 1
          %s501 = smul.addr %s500, 16
          %s502 = scalar_lea.vmem [#allocation10], %s501
          %s504 = ssub.s32 256, 256
          %505 = vsyncadd %s499, %s504
          %s506 = smul.addr %s33, 4
          %s507 = smul.addr %s506, 64
          %s508 = scalar_lea.hbm %s7, %s507
          %s509 = sshll.u32 %s502, 4
          %s510 = int_to_ptr.vmem [resolvable:$true] %s509
          %515 = dma.hbm_to_vmem [thread:$0]  %s508, 256, %s510, %s499, 64, 64, 4
        $region48: #{tpu_custom_call.1} parent=15 // pred_fallthru
          _
        // Predicated region
        $region49: #{tpu_custom_call.1} parent=15 // pred_check
          %p516 = pneg %p261
        $region50: #{tpu_custom_call.1} parent=15 // pred_check_branch
          %518 = sbr.rel (%p516) target = $region52
        $region51: #{tpu_custom_call.1} parent=15 // pred_region
          %s519 = sand.u32 %s251, 1
          %s520 = scalar_lea.sflag [#allocation12], %s519
          %s521 = sand.u32 %s251, 1
          %s522 = smul.addr %s521, 16
          %s523 = scalar_lea.vmem [#allocation11], %s522
          %s525 = ssub.s32 256, 256
          %526 = vsyncadd %s520, %s525
          %s527 = smul.addr %s33, 4
          %s528 = smul.addr %s527, 64
          %s529 = scalar_lea.hbm %s8, %s528
          %s530 = sshll.u32 %s523, 4
          %s531 = int_to_ptr.vmem [resolvable:$true] %s530
          %536 = dma.hbm_to_vmem [thread:$0]  %s529, 256, %s531, %s520, 64, 64, 4
        $region52: #{tpu_custom_call.1} parent=15 // pred_fallthru
          _
        // Predicated region
        $region53: #{tpu_custom_call.1} parent=15 // pred_check
          %p537 = pneg %p287
        $region54: #{tpu_custom_call.1} parent=15 // pred_check_branch
          %539 = sbr.rel (%p537) target = $region56
        $region55: #{tpu_custom_call.1} parent=15 // pred_region
          %p540 = scmp.lt.s32.totalorder %s33, 1
          %s541 = scalar_select %p540, %s33, 1
          %s542 = scalar_lea.vmem %s9, %s541
        $region56: #{tpu_custom_call.1} parent=15 // pred_fallthru
          _
        // Predicated region
        $region57: #{tpu_custom_call.1} parent=15 // pred_check
          %p543 = pneg %p313
        $region58: #{tpu_custom_call.1} parent=15 // pred_check_branch
          %545 = sbr.rel (%p543) target = $region60
        $region59: #{tpu_custom_call.1} parent=15 // pred_region
          %p546 = scmp.lt.s32.totalorder %s33, 1
          %s547 = scalar_select %p546, %s33, 1
          %s548 = scalar_lea.vmem %s10, %s547
        $region60: #{tpu_custom_call.1} parent=15 // pred_fallthru
          _
        // Predicated region
        $region61: #{tpu_custom_call.1} parent=15 // pred_check
          %p549 = pneg %p339
        $region62: #{tpu_custom_call.1} parent=15 // pred_check_branch
          %551 = sbr.rel (%p549) target = $region64
        $region63: #{tpu_custom_call.1} parent=15 // pred_region
          %p552 = scmp.lt.s32.totalorder %s33, 1
          %s553 = scalar_select %p552, %s33, 1
          %s554 = scalar_lea.vmem %s11, %s553
        $region64: #{tpu_custom_call.1} parent=15 // pred_fallthru
          _
      $region16: #{tpu_custom_call.1} parent=5 // pred_fallthru
        _
      %p555 = scmp.le.s32.totalorder 1, %s33
      %p556 = scmp.lt.s32.totalorder %s33, 3
      %p557 = pnand %p555, %p556
      %p558 = pneg %p557
      // Predicated region
      $region65: #{tpu_custom_call.1} parent=5 // pred_check
        _
      $region66: #{tpu_custom_call.1} parent=5 // pred_check_branch
        %560 = sbr.rel (%p557) target = $region68
      $region67: #{tpu_custom_call.1} parent=5 // pred_region
        %s561 = ssub.s32 %s33, 1
        %s562 = sand.u32 %s124, 1
        %s563 = scalar_lea.sflag [#allocation3], %s562
        %s564 = sand.u32 %s124, 1
        %s565 = smul.addr %s564, 16
        %s566 = scalar_lea.vmem [#allocation2], %s565
        // Predicated region
        $region69: #{tpu_custom_call.1} parent=67 // pred_check
          %p567 = pneg %p137
        $region70: #{tpu_custom_call.1} parent=67 // pred_check_branch
          %569 = sbr.rel (%p567) target = $region72
        $region71: #{tpu_custom_call.1} parent=67 // pred_region
          %570 = dma.done %s563, 256
        $region72: #{tpu_custom_call.1} parent=67 // pred_fallthru
          _
        %s571 = sand.u32 %s38, 1
        %s572 = scalar_lea.sflag [#allocation6], %s571
        %s573 = sand.u32 %s150, 1
        %s574 = smul.addr %s573, 8
        %s575 = scalar_lea.vmem [#allocation5], %s574
        // Predicated region
        $region73: #{tpu_custom_call.1} parent=67 // pred_check
          %p576 = pneg %p163
        $region74: #{tpu_custom_call.1} parent=67 // pred_check_branch
          %578 = sbr.rel (%p576) target = $region76
        $region75: #{tpu_custom_call.1} parent=67 // pred_region
          %579 = dma.done %s572, 128
        $region76: #{tpu_custom_call.1} parent=67 // pred_fallthru
          _
        %s580 = sand.u32 %s38, 1
        %s581 = scalar_lea.sflag [#allocation6], %s580
        %s582 = sand.u32 %s176, 1
        %s583 = smul.addr %s582, 16
        %s584 = scalar_lea.vmem [#allocation7], %s583
        // Predicated region
        $region77: #{tpu_custom_call.1} parent=67 // pred_check
          %p585 = pneg %p189
        $region78: #{tpu_custom_call.1} parent=67 // pred_check_branch
          %587 = sbr.rel (%p585) target = $region80
        $region79: #{tpu_custom_call.1} parent=67 // pred_region
          %588 = dma.done %s581, 256
        $region80: #{tpu_custom_call.1} parent=67 // pred_fallthru
          _
        %s589 = sand.u32 %s38, 1
        %s590 = scalar_lea.sflag [#allocation9], %s589
        %s591 = sand.u32 %s202, 1
        %s592 = smul.addr %s591, 16
        %s593 = scalar_lea.vmem [#allocation8], %s592
        // Predicated region
        $region81: #{tpu_custom_call.1} parent=67 // pred_check
          %p594 = pneg %p215
        $region82: #{tpu_custom_call.1} parent=67 // pred_check_branch
          %596 = sbr.rel (%p594) target = $region84
        $region83: #{tpu_custom_call.1} parent=67 // pred_region
          %597 = dma.done %s590, 256
        $region84: #{tpu_custom_call.1} parent=67 // pred_fallthru
          _
        %s598 = sand.u32 %s38, 1
        %s599 = scalar_lea.sflag [#allocation9], %s598
        %s600 = sand.u32 %s228, 1
        %s601 = smul.addr %s600, 16
        %s602 = scalar_lea.vmem [#allocation10], %s601
        // Predicated region
        $region85: #{tpu_custom_call.1} parent=67 // pred_check
          %p603 = pneg %p241
        $region86: #{tpu_custom_call.1} parent=67 // pred_check_branch
          %605 = sbr.rel (%p603) target = $region88
        $region87: #{tpu_custom_call.1} parent=67 // pred_region
          %606 = dma.done %s599, 256
        $region88: #{tpu_custom_call.1} parent=67 // pred_fallthru
          _
        %s607 = sand.u32 %s254, 1
        %s608 = scalar_lea.sflag [#allocation12], %s607
        %s609 = sand.u32 %s254, 1
        %s610 = smul.addr %s609, 16
        %s611 = scalar_lea.vmem [#allocation11], %s610
        // Predicated region
        $region89: #{tpu_custom_call.1} parent=67 // pred_check
          %p612 = pneg %p267
        $region90: #{tpu_custom_call.1} parent=67 // pred_check_branch
          %614 = sbr.rel (%p612) target = $region92
        $region91: #{tpu_custom_call.1} parent=67 // pred_region
          %615 = dma.done %s608, 256
        $region92: #{tpu_custom_call.1} parent=67 // pred_fallthru
          _
        %p616 = scmp.lt.s32.totalorder %s38, 1
        %s617 = scalar_select %p616, %s38, 1
        %s618 = smul.addr %s617, 4
        %s619 = smul.addr %s618, 4
        %s620 = scalar_lea.vmem %s0, %s619
        %p621 = pneg %p59
        %p622 = pneg %p56
        %p623 = scmp.lt.s32.totalorder %s38, 1
        %s624 = scalar_select %p623, %s38, 1
        %s625 = smul.addr %s624, 16
        %s626 = smul.addr %s625, 4
        %s627 = scalar_lea.vmem %s1, %s626
        %p628 = pneg %p85
        %p629 = pneg %p82
        %p630 = scmp.lt.s32.totalorder %s38, 1
        %s631 = scalar_select %p630, %s38, 1
        %s632 = smul.addr %s631, 16
        %s633 = smul.addr %s632, 4
        %s634 = scalar_lea.vmem %s2, %s633
        %p635 = pneg %p111
        %p636 = pneg %p108
        %s637 = sand.u32 %s124, 1
        %s638 = scalar_lea.sflag [#allocation3], %s637
        %s639 = sand.u32 %s124, 1
        %s640 = smul.addr %s639, 16
        %s641 = scalar_lea.vmem [#allocation2], %s640
        %p642 = pneg %p137
        %p643 = pneg %p134
        %s644 = sand.u32 %s38, 1
        %s645 = scalar_lea.sflag [#allocation6], %s644
        %s646 = sand.u32 %s150, 1
        %s647 = smul.addr %s646, 8
        %s648 = scalar_lea.vmem [#allocation5], %s647
        %p649 = pneg %p163
        %p650 = pneg %p160
        %s651 = sand.u32 %s38, 1
        %s652 = scalar_lea.sflag [#allocation6], %s651
        %s653 = sand.u32 %s176, 1
        %s654 = smul.addr %s653, 16
        %s655 = scalar_lea.vmem [#allocation7], %s654
        %p656 = pneg %p189
        %p657 = pneg %p186
        %s658 = sand.u32 %s38, 1
        %s659 = scalar_lea.sflag [#allocation9], %s658
        %s660 = sand.u32 %s202, 1
        %s661 = smul.addr %s660, 16
        %s662 = scalar_lea.vmem [#allocation8], %s661
        %p663 = pneg %p215
        %p664 = pneg %p212
        %s665 = sand.u32 %s38, 1
        %s666 = scalar_lea.sflag [#allocation9], %s665
        %s667 = sand.u32 %s228, 1
        %s668 = smul.addr %s667, 16
        %s669 = scalar_lea.vmem [#allocation10], %s668
        %p670 = pneg %p241
        %p671 = pneg %p238
        %s672 = sand.u32 %s254, 1
        %s673 = scalar_lea.sflag [#allocation12], %s672
        %s674 = sand.u32 %s254, 1
        %s675 = smul.addr %s674, 16
        %s676 = scalar_lea.vmem [#allocation11], %s675
        %p677 = pneg %p267
        %p678 = pneg %p264
        %p679 = scmp.lt.s32.totalorder %s38, 1
        %s680 = scalar_select %p679, %s38, 1
        %s681 = scalar_lea.vmem %s9, %s680
        %p682 = pneg %p293
        %p683 = pneg %p290
        %p684 = scmp.lt.s32.totalorder %s38, 1
        %s685 = scalar_select %p684, %s38, 1
        %s686 = scalar_lea.vmem %s10, %s685
        %p687 = pneg %p319
        %p688 = pneg %p316
        %p689 = scmp.lt.s32.totalorder %s38, 1
        %s690 = scalar_select %p689, %s38, 1
        %s691 = scalar_lea.vmem %s11, %s690
        %p692 = pneg %p345
        %p693 = pneg %p342
        %p694 = pneg %p371
        %p695 = pneg %p368
        %s696 = sand.u32 %s358, 1
        %s697 = scalar_lea.sflag [#allocation4], %s696
        %s698 = sand.u32 %s358, 1
        %s699 = smul.addr %s698, 8
        %s700 = scalar_lea.vmem [#allocation13], %s699
        %p701 = scmp.lt.s32.totalorder %s38, 1
        %s702 = scalar_select %p701, %s38, 1
        %s703 = smul.addr %s702, 4
        %s704 = smul.addr %s703, 4
        %s705 = scalar_lea.vmem %s0, %s704
        %p706 = scmp.lt.s32.totalorder %s38, 1
        %s707 = scalar_select %p706, %s38, 1
        %s708 = smul.addr %s707, 16
        %s709 = smul.addr %s708, 4
        %s710 = scalar_lea.vmem %s1, %s709
        %p711 = scmp.lt.s32.totalorder %s38, 1
        %s712 = scalar_select %p711, %s38, 1
        %s713 = smul.addr %s712, 16
        %s714 = smul.addr %s713, 4
        %s715 = scalar_lea.vmem %s2, %s714
        %p716 = scmp.lt.s32.totalorder %s38, 1
        %s717 = scalar_select %p716, %s38, 1
        %s718 = scalar_lea.vmem %s9, %s717
        %p719 = scmp.lt.s32.totalorder %s38, 1
        %s720 = scalar_select %p719, %s38, 1
        %s721 = scalar_lea.vmem %s10, %s720
        %p722 = scmp.lt.s32.totalorder %s38, 1
        %s723 = scalar_select %p722, %s38, 1
        %s724 = scalar_lea.vmem %s11, %s723
        %v726 = vld [vmem:[%s710] sm:$0xf]
        %v727 = vld [vmem:[%s710 + $0x4] sm:$0xf]
        %v728 = vld [vmem:[%s710 + $0x8] sm:$0xf]
        %v729 = vld [vmem:[%s710 + $0xc] sm:$0xf]
        %v730 = vld [vmem:[%s710 + $0x10] sm:$0xf]
        %v731 = vld [vmem:[%s710 + $0x14] sm:$0xf]
        %v732 = vld [vmem:[%s710 + $0x18] sm:$0xf]
        %v733 = vld [vmem:[%s710 + $0x1c] sm:$0xf]
        %v734 = vld [vmem:[%s710 + $0x20] sm:$0xf]
        %v735 = vld [vmem:[%s710 + $0x24] sm:$0xf]
        %v736 = vld [vmem:[%s710 + $0x28] sm:$0xf]
        %v737 = vld [vmem:[%s710 + $0x2c] sm:$0xf]
        %v738 = vld [vmem:[%s710 + $0x30] sm:$0xf]
        %v739 = vld [vmem:[%s710 + $0x34] sm:$0xf]
        %v740 = vld [vmem:[%s710 + $0x38] sm:$0xf]
        %v741 = vld [vmem:[%s710 + $0x3c] sm:$0xf]
        %v742 = vld [vmem:[%s715] sm:$0xf]
        %v743 = vld [vmem:[%s715 + $0x4] sm:$0xf]
        %v744 = vld [vmem:[%s715 + $0x8] sm:$0xf]
        %v745 = vld [vmem:[%s715 + $0xc] sm:$0xf]
        %v746 = vld [vmem:[%s715 + $0x10] sm:$0xf]
        %v747 = vld [vmem:[%s715 + $0x14] sm:$0xf]
        %v748 = vld [vmem:[%s715 + $0x18] sm:$0xf]
        %v749 = vld [vmem:[%s715 + $0x1c] sm:$0xf]
        %v750 = vld [vmem:[%s715 + $0x20] sm:$0xf]
        %v751 = vld [vmem:[%s715 + $0x24] sm:$0xf]
        %v752 = vld [vmem:[%s715 + $0x28] sm:$0xf]
        %v753 = vld [vmem:[%s715 + $0x2c] sm:$0xf]
        %v754 = vld [vmem:[%s715 + $0x30] sm:$0xf]
        %v755 = vld [vmem:[%s715 + $0x34] sm:$0xf]
        %v756 = vld [vmem:[%s715 + $0x38] sm:$0xf]
        %v757 = vld [vmem:[%s715 + $0x3c] sm:$0xf]
        %v758 = vld [vmem:[%s584] sm:$0xf]
        %v759 = vld [vmem:[%s584 + $0x4] sm:$0xf]
        %v760 = vld [vmem:[%s584 + $0x8] sm:$0xf]
        %v761 = vld [vmem:[%s584 + $0xc] sm:$0xf]
        %v762 = vld [vmem:[%s593] sm:$0xf]
        %v763 = vld [vmem:[%s593 + $0x4] sm:$0xf]
        %v764 = vld [vmem:[%s593 + $0x8] sm:$0xf]
        %v765 = vld [vmem:[%s593 + $0xc] sm:$0xf]
        %v766 = vld [vmem:[%s718] sm:$0x1]
        %v767 = vld [vmem:[%s721] sm:$0x1]
        %v769 = vlaneseq
        %v770 = vshrl.u32 %v769, 7
        %v771 = vsub.s32 0, %v770
        %v772 = vrot.slane %v766, %v771
        %v790 = vunpack.c.l.b16 %v726
        %v791 = vunpack.c.l.b16 %v727
        %v792 = vunpack.c.l.b16 %v728
        %v793 = vunpack.c.l.b16 %v729
        %v794 = vunpack.c.l.b16 %v730
        %v795 = vunpack.c.l.b16 %v731
        %v796 = vunpack.c.l.b16 %v732
        %v797 = vunpack.c.l.b16 %v733
        %v798 = vunpack.c.l.b16 %v734
        %v799 = vunpack.c.l.b16 %v735
        %v800 = vunpack.c.l.b16 %v736
        %v801 = vunpack.c.l.b16 %v737
        %v802 = vunpack.c.l.b16 %v738
        %v803 = vunpack.c.l.b16 %v739
        %v804 = vunpack.c.l.b16 %v740
        %v805 = vunpack.c.l.b16 %v741
        %v806 = vpack.c.b16 %v791, %v790
        %v807 = vpack.c.b16 %v793, %v792
        %v808 = vpack.c.b16 %v795, %v794
        %v809 = vpack.c.b16 %v797, %v796
        %v810 = vpack.c.b16 %v799, %v798
        %v811 = vpack.c.b16 %v801, %v800
        %v812 = vpack.c.b16 %v803, %v802
        %v813 = vpack.c.b16 %v805, %v804
        %v818 = vunpack.c.l.b16 %v758
        %v819 = vunpack.c.l.b16 %v759
        %v820 = vunpack.c.l.b16 %v760
        %v821 = vunpack.c.l.b16 %v761
        %v822 = vpack.c.b16 %v819, %v818
        %v823 = vpack.c.b16 %v821, %v820
        %vm826 = vcmask 261120
        %v828 = vsel %vm826, %v806, 0
        %v831 = vsel %vm826, %v807, 0
        %v834 = vsel %vm826, %v808, 0
        %v837 = vsel %vm826, %v809, 0
        %v840 = vsel %vm826, %v810, 0
        %v843 = vsel %vm826, %v811, 0
        %v846 = vsel %vm826, %v812, 0
        %v849 = vsel %vm826, %v813, 0
        %851 = vmatprep.subr.bf16.mxu0 0
        %852 = vmatpush1.bf16.msra.mxu0 %v822
        %853 = vmatprep.subr.bf16.mxu0 0
        %854 = vmatpush1.bf16.msra.mxu0 %v823
        %855 = vmatprep.subr.bf16.mxu0 0
        %856 = vmatpush1.bf16.msra.mxu0 0
        %857 = vmatprep.subr.bf16.mxu0 0
        %858 = vmatpush1.bf16.msra.mxu0 0
        %859 = vmatprep.subr.bf16.mxu0 0
        %860 = vmatpush1.bf16.msra.mxu0 0
        %861 = vmatprep.subr.bf16.mxu0 0
        %862 = vmatpush1.bf16.msra.mxu0 0
        %863 = vmatprep.subr.bf16.mxu0 0
        %864 = vmatpush1.bf16.msra.mxu0 0
        %865 = vmatprep.subr.bf16.mxu0 0
        %866 = vmatpush1.bf16.msra.mxu0 0
        %867 = vmatprep.subr.bf16.mxu0 0
        %868 = vmatpush1.bf16.msra.mxu0 0
        %869 = vmatprep.subr.bf16.mxu0 0
        %870 = vmatpush1.bf16.msra.mxu0 0
        %871 = vmatprep.subr.bf16.mxu0 0
        %872 = vmatpush1.bf16.msra.mxu0 0
        %873 = vmatprep.subr.bf16.mxu0 0
        %874 = vmatpush1.bf16.msra.mxu0 0
        %875 = vmatprep.subr.bf16.mxu0 0
        %876 = vmatpush1.bf16.msra.mxu0 0
        %877 = vmatprep.subr.bf16.mxu0 0
        %878 = vmatpush1.bf16.msra.mxu0 0
        %879 = vmatprep.subr.bf16.mxu0 0
        %880 = vmatpush1.bf16.msra.mxu0 0
        %881 = vmatprep.subr.bf16.mxu0 0
        %882 = vmatpush1.bf16.msra.mxu0 0
        %883 = vmatprep.mubr.bf16.mxu0 0
        %884 = vmatmul.mubr.bf16.gmra.mrb[0].mxu0 %v828
        %v885 = vpop.f32.mrb[0].mxu0
        %v886 = vadd.f32 %v772, %v885
        %v887 = vpop.f32.mrb[0].mxu0
        %v888 = vpop.f32.mrb[0].mxu0
        %v889 = vadd.f32 %v772, %v888
        %v890 = vpop.f32.mrb[0].mxu0
        %891 = vmatprep.mubr.bf16.mxu0 0
        %892 = vmatmul.mubr.bf16.gmra.mrb[0].mxu0 %v831
        %v893 = vpop.f32.mrb[0].mxu0
        %v894 = vadd.f32 %v772, %v893
        %v895 = vpop.f32.mrb[0].mxu0
        %v896 = vpop.f32.mrb[0].mxu0
        %v897 = vadd.f32 %v772, %v896
        %v898 = vpop.f32.mrb[0].mxu0
        %899 = vmatprep.mubr.bf16.mxu0 0
        %900 = vmatmul.mubr.bf16.gmra.mrb[0].mxu0 %v834
        %v901 = vpop.f32.mrb[0].mxu0
        %v902 = vadd.f32 %v772, %v901
        %v903 = vpop.f32.mrb[0].mxu0
        %v904 = vpop.f32.mrb[0].mxu0
        %v905 = vadd.f32 %v772, %v904
        %v906 = vpop.f32.mrb[0].mxu0
        %907 = vmatprep.mubr.bf16.mxu0 0
        %908 = vmatmul.mubr.bf16.gmra.mrb[0].mxu0 %v837
        %v909 = vpop.f32.mrb[0].mxu0
        %v910 = vadd.f32 %v772, %v909
        %v911 = vpop.f32.mrb[0].mxu0
        %v912 = vpop.f32.mrb[0].mxu0
        %v913 = vadd.f32 %v772, %v912
        %v914 = vpop.f32.mrb[0].mxu0
        %915 = vmatprep.mubr.bf16.mxu0 0
        %916 = vmatmul.mubr.bf16.gmra.mrb[0].mxu0 %v840
        %v917 = vpop.f32.mrb[0].mxu0
        %v918 = vadd.f32 %v772, %v917
        %v919 = vpop.f32.mrb[0].mxu0
        %v920 = vpop.f32.mrb[0].mxu0
        %v921 = vadd.f32 %v772, %v920
        %v922 = vpop.f32.mrb[0].mxu0
        %923 = vmatprep.mubr.bf16.mxu0 0
        %924 = vmatmul.mubr.bf16.gmra.mrb[0].mxu0 %v843
        %v925 = vpop.f32.mrb[0].mxu0
        %v926 = vadd.f32 %v772, %v925
        %v927 = vpop.f32.mrb[0].mxu0
        %v928 = vpop.f32.mrb[0].mxu0
        %v929 = vadd.f32 %v772, %v928
        %v930 = vpop.f32.mrb[0].mxu0
        %931 = vmatprep.mubr.bf16.mxu0 0
        %932 = vmatmul.mubr.bf16.gmra.mrb[0].mxu0 %v846
        %v933 = vpop.f32.mrb[0].mxu0
        %v934 = vadd.f32 %v772, %v933
        %v935 = vpop.f32.mrb[0].mxu0
        %v936 = vpop.f32.mrb[0].mxu0
        %v937 = vadd.f32 %v772, %v936
        %v938 = vpop.f32.mrb[0].mxu0
        %939 = vmatprep.mubr.bf16.mxu0 0
        %940 = vmatmul.mubr.bf16.gmra.mrb[0].mxu0 %v849
        %v941 = vpop.f32.mrb[0].mxu0
        %v942 = vadd.f32 %v772, %v941
        %v943 = vpop.f32.mrb[0].mxu0
        %v944 = vpop.f32.mrb[0].mxu0
        %v945 = vadd.f32 %v772, %v944
        %v946 = vpop.f32.mrb[0].mxu0
        %947 = vdwg.mxu0
        %v948 = vmax.f32 %v886, 0.0
        %v949 = vmax.f32 %v889, 0.0
        %v950 = vmax.f32 %v894, 0.0
        %v951 = vmax.f32 %v897, 0.0
        %v952 = vmax.f32 %v902, 0.0
        %v953 = vmax.f32 %v905, 0.0
        %v954 = vmax.f32 %v910, 0.0
        %v955 = vmax.f32 %v913, 0.0
        %v956 = vmax.f32 %v918, 0.0
        %v957 = vmax.f32 %v921, 0.0
        %v958 = vmax.f32 %v926, 0.0
        %v959 = vmax.f32 %v929, 0.0
        %v960 = vmax.f32 %v934, 0.0
        %v961 = vmax.f32 %v937, 0.0
        %v962 = vmax.f32 %v942, 0.0
        %v963 = vmax.f32 %v945, 0.0
        %v965 = vlaneseq
        %v966 = vshrl.u32 %v965, 7
        %v967 = vsub.s32 0, %v966
        %v968 = vrot.slane %v767, %v967
        %v970 = vadd.f32 %v948, %v968
        %v971 = vadd.f32 %v949, %v968
        %v972 = vadd.f32 %v950, %v968
        %v973 = vadd.f32 %v951, %v968
        %v974 = vadd.f32 %v952, %v968
        %v975 = vadd.f32 %v953, %v968
        %v976 = vadd.f32 %v954, %v968
        %v977 = vadd.f32 %v955, %v968
        %v978 = vadd.f32 %v956, %v968
        %v979 = vadd.f32 %v957, %v968
        %v980 = vadd.f32 %v958, %v968
        %v981 = vadd.f32 %v959, %v968
        %v982 = vadd.f32 %v960, %v968
        %v983 = vadd.f32 %v961, %v968
        %v984 = vadd.f32 %v962, %v968
        %v985 = vadd.f32 %v963, %v968
        %v986 = vpack.c.bf16 %v949, %v948
        %v987 = vpack.c.bf16 %v951, %v950
        %v988 = vpack.c.bf16 %v953, %v952
        %v989 = vpack.c.bf16 %v955, %v954
        %v990 = vpack.c.bf16 %v957, %v956
        %v991 = vpack.c.bf16 %v959, %v958
        %v992 = vpack.c.bf16 %v961, %v960
        %v993 = vpack.c.bf16 %v963, %v962
        %v1010 = vunpack.c.l.b16 %v742
        %v1011 = vunpack.c.l.b16 %v743
        %v1012 = vunpack.c.l.b16 %v744
        %v1013 = vunpack.c.l.b16 %v745
        %v1014 = vunpack.c.l.b16 %v746
        %v1015 = vunpack.c.l.b16 %v747
        %v1016 = vunpack.c.l.b16 %v748
        %v1017 = vunpack.c.l.b16 %v749
        %v1018 = vunpack.c.l.b16 %v750
        %v1019 = vunpack.c.l.b16 %v751
        %v1020 = vunpack.c.l.b16 %v752
        %v1021 = vunpack.c.l.b16 %v753
        %v1022 = vunpack.c.l.b16 %v754
        %v1023 = vunpack.c.l.b16 %v755
        %v1024 = vunpack.c.l.b16 %v756
        %v1025 = vunpack.c.l.b16 %v757
        %v1026 = vpack.c.b16 %v1011, %v1010
        %v1027 = vpack.c.b16 %v1013, %v1012
        %v1028 = vpack.c.b16 %v1015, %v1014
        %v1029 = vpack.c.b16 %v1017, %v1016
        %v1030 = vpack.c.b16 %v1019, %v1018
        %v1031 = vpack.c.b16 %v1021, %v1020
        %v1032 = vpack.c.b16 %v1023, %v1022
        %v1033 = vpack.c.b16 %v1025, %v1024
        %1042 = vmatprep.subr.bf16.mxu0 0
        %1043 = vmatpush1.bf16.msra.mxu0 %v986
        %1044 = vmatprep.subr.bf16.mxu0 0
        %1045 = vmatpush1.bf16.msra.mxu0 %v987
        %1046 = vmatprep.subr.bf16.mxu0 0
        %1047 = vmatpush1.bf16.msra.mxu0 %v988
        %1048 = vmatprep.subr.bf16.mxu0 0
        %1049 = vmatpush1.bf16.msra.mxu0 %v989
        %1050 = vmatprep.subr.bf16.mxu0 0
        %1051 = vmatpush1.bf16.msra.mxu0 %v990
        %1052 = vmatprep.subr.bf16.mxu0 0
        %1053 = vmatpush1.bf16.msra.mxu0 %v991
        %1054 = vmatprep.subr.bf16.mxu0 0
        %1055 = vmatpush1.bf16.msra.mxu0 %v992
        %1056 = vmatprep.subr.bf16.mxu0 0
        %1057 = vmatpush1.bf16.msra.mxu0 %v993
        %1058 = vmatprep.subr.bf16.mxu0 0
        %1059 = vmatpush1.bf16.msra.mxu0 0
        %1060 = vmatprep.subr.bf16.mxu0 0
        %1061 = vmatpush1.bf16.msra.mxu0 0
        %1062 = vmatprep.subr.bf16.mxu0 0
        %1063 = vmatpush1.bf16.msra.mxu0 0
        %1064 = vmatprep.subr.bf16.mxu0 0
        %1065 = vmatpush1.bf16.msra.mxu0 0
        %1066 = vmatprep.subr.bf16.mxu0 0
        %1067 = vmatpush1.bf16.msra.mxu0 0
        %1068 = vmatprep.subr.bf16.mxu0 0
        %1069 = vmatpush1.bf16.msra.mxu0 0
        %1070 = vmatprep.subr.bf16.mxu0 0
        %1071 = vmatpush1.bf16.msra.mxu0 0
        %1072 = vmatprep.subr.bf16.mxu0 0
        %1073 = vmatpush1.bf16.msra.mxu0 0
        %1074 = vmatprep.mubr.bf16.mxu0 0
        %1075 = vmatmul.mubr.bf16.gmra.mrb[0].mxu0 %v1026
        %v1076 = vpop.f32.mrb[0].mxu0
        %v1077 = vadd.f32 0.0, %v1076
        %v1078 = vpop.f32.mrb[0].mxu0
        %v1079 = vpop.f32.mrb[0].mxu0
        %v1080 = vadd.f32 0.0, %v1079
        %v1081 = vpop.f32.mrb[0].mxu0
        %1082 = vmatprep.mubr.bf16.mxu0 0
        %1083 = vmatmul.mubr.bf16.gmra.mrb[0].mxu0 %v1027
        %v1084 = vpop.f32.mrb[0].mxu0
        %v1085 = vadd.f32 0.0, %v1084
        %v1086 = vpop.f32.mrb[0].mxu0
        %v1087 = vpop.f32.mrb[0].mxu0
        %v1088 = vadd.f32 0.0, %v1087
        %v1089 = vpop.f32.mrb[0].mxu0
        %1090 = vmatprep.mubr.bf16.mxu0 0
        %1091 = vmatmul.mubr.bf16.gmra.mrb[0].mxu0 %v1028
        %v1092 = vpop.f32.mrb[0].mxu0
        %v1093 = vadd.f32 0.0, %v1092
        %v1094 = vpop.f32.mrb[0].mxu0
        %v1095 = vpop.f32.mrb[0].mxu0
        %v1096 = vadd.f32 0.0, %v1095
        %v1097 = vpop.f32.mrb[0].mxu0
        %1098 = vmatprep.mubr.bf16.mxu0 0
        %1099 = vmatmul.mubr.bf16.gmra.mrb[0].mxu0 %v1029
        %v1100 = vpop.f32.mrb[0].mxu0
        %v1101 = vadd.f32 0.0, %v1100
        %v1102 = vpop.f32.mrb[0].mxu0
        %v1103 = vpop.f32.mrb[0].mxu0
        %v1104 = vadd.f32 0.0, %v1103
        %v1105 = vpop.f32.mrb[0].mxu0
        %1106 = vmatprep.mubr.bf16.mxu0 0
        %1107 = vmatmul.mubr.bf16.gmra.mrb[0].mxu0 %v1030
        %v1108 = vpop.f32.mrb[0].mxu0
        %v1109 = vadd.f32 0.0, %v1108
        %v1110 = vpop.f32.mrb[0].mxu0
        %v1111 = vpop.f32.mrb[0].mxu0
        %v1112 = vadd.f32 0.0, %v1111
        %v1113 = vpop.f32.mrb[0].mxu0
        %1114 = vmatprep.mubr.bf16.mxu0 0
        %1115 = vmatmul.mubr.bf16.gmra.mrb[0].mxu0 %v1031
        %v1116 = vpop.f32.mrb[0].mxu0
        %v1117 = vadd.f32 0.0, %v1116
        %v1118 = vpop.f32.mrb[0].mxu0
        %v1119 = vpop.f32.mrb[0].mxu0
        %v1120 = vadd.f32 0.0, %v1119
        %v1121 = vpop.f32.mrb[0].mxu0
        %1122 = vmatprep.mubr.bf16.mxu0 0
        %1123 = vmatmul.mubr.bf16.gmra.mrb[0].mxu0 %v1032
        %v1124 = vpop.f32.mrb[0].mxu0
        %v1125 = vadd.f32 0.0, %v1124
        %v1126 = vpop.f32.mrb[0].mxu0
        %v1127 = vpop.f32.mrb[0].mxu0
        %v1128 = vadd.f32 0.0, %v1127
        %v1129 = vpop.f32.mrb[0].mxu0
        %1130 = vmatprep.mubr.bf16.mxu0 0
        %1131 = vmatmul.mubr.bf16.gmra.mrb[0].mxu0 %v1033
        %v1132 = vpop.f32.mrb[0].mxu0
        %v1133 = vadd.f32 0.0, %v1132
        %v1134 = vpop.f32.mrb[0].mxu0
        %v1135 = vpop.f32.mrb[0].mxu0
        %v1136 = vadd.f32 0.0, %v1135
        %v1137 = vpop.f32.mrb[0].mxu0
        %1138 = vdwg.mxu0
        %v1139 = vpack.c.bf16 %v1080, %v1077
        %v1140 = vpack.c.bf16 %v1088, %v1085
        %v1141 = vpack.c.bf16 %v1096, %v1093
        %v1142 = vpack.c.bf16 %v1104, %v1101
        %v1143 = vpack.c.bf16 %v1112, %v1109
        %v1144 = vpack.c.bf16 %v1120, %v1117
        %v1145 = vpack.c.bf16 %v1128, %v1125
        %v1146 = vpack.c.bf16 %v1136, %v1133
        %v1151 = vunpack.c.l.b16 %v762
        %v1152 = vunpack.c.l.b16 %v763
        %v1153 = vunpack.c.l.b16 %v764
        %v1154 = vunpack.c.l.b16 %v765
        %v1155 = vpack.c.b16 %v1152, %v1151
        %v1156 = vpack.c.b16 %v1154, %v1153
        %v1160 = vsel %vm826, %v1139, 0
        %v1163 = vsel %vm826, %v1140, 0
        %v1166 = vsel %vm826, %v1141, 0
        %v1169 = vsel %vm826, %v1142, 0
        %v1172 = vsel %vm826, %v1143, 0
        %v1175 = vsel %vm826, %v1144, 0
        %v1178 = vsel %vm826, %v1145, 0
        %v1181 = vsel %vm826, %v1146, 0
        %1183 = vmatprep.subr.bf16.mxu0 0
        %1184 = vmatpush1.bf16.msra.mxu0 %v1155
        %1185 = vmatprep.subr.bf16.mxu0 0
        %1186 = vmatpush1.bf16.msra.mxu0 %v1156
        %1187 = vmatprep.subr.bf16.mxu0 0
        %1188 = vmatpush1.bf16.msra.mxu0 0
        %1189 = vmatprep.subr.bf16.mxu0 0
        %1190 = vmatpush1.bf16.msra.mxu0 0
        %1191 = vmatprep.subr.bf16.mxu0 0
        %1192 = vmatpush1.bf16.msra.mxu0 0
        %1193 = vmatprep.subr.bf16.mxu0 0
        %1194 = vmatpush1.bf16.msra.mxu0 0
        %1195 = vmatprep.subr.bf16.mxu0 0
        %1196 = vmatpush1.bf16.msra.mxu0 0
        %1197 = vmatprep.subr.bf16.mxu0 0
        %1198 = vmatpush1.bf16.msra.mxu0 0
        %1199 = vmatprep.subr.bf16.mxu0 0
        %1200 = vmatpush1.bf16.msra.mxu0 0
        %1201 = vmatprep.subr.bf16.mxu0 0
        %1202 = vmatpush1.bf16.msra.mxu0 0
        %1203 = vmatprep.subr.bf16.mxu0 0
        %1204 = vmatpush1.bf16.msra.mxu0 0
        %1205 = vmatprep.subr.bf16.mxu0 0
        %1206 = vmatpush1.bf16.msra.mxu0 0
        %1207 = vmatprep.subr.bf16.mxu0 0
        %1208 = vmatpush1.bf16.msra.mxu0 0
        %1209 = vmatprep.subr.bf16.mxu0 0
        %1210 = vmatpush1.bf16.msra.mxu0 0
        %1211 = vmatprep.subr.bf16.mxu0 0
        %1212 = vmatpush1.bf16.msra.mxu0 0
        %1213 = vmatprep.subr.bf16.mxu0 0
        %1214 = vmatpush1.bf16.msra.mxu0 0
        %1215 = vmatprep.mubr.bf16.mxu0 0
        %1216 = vmatmul.mubr.bf16.gmra.mrb[0].mxu0 %v1160
        %v1217 = vpop.f32.mrb[0].mxu0
        %v1218 = vadd.f32 0.0, %v1217
        %v1219 = vpop.f32.mrb[0].mxu0
        %v1220 = vpop.f32.mrb[0].mxu0
        %v1221 = vadd.f32 0.0, %v1220
        %v1222 = vpop.f32.mrb[0].mxu0
        %1223 = vmatprep.mubr.bf16.mxu0 0
        %1224 = vmatmul.mubr.bf16.gmra.mrb[0].mxu0 %v1163
        %v1225 = vpop.f32.mrb[0].mxu0
        %v1226 = vadd.f32 0.0, %v1225
        %v1227 = vpop.f32.mrb[0].mxu0
        %v1228 = vpop.f32.mrb[0].mxu0
        %v1229 = vadd.f32 0.0, %v1228
        %v1230 = vpop.f32.mrb[0].mxu0
        %1231 = vmatprep.mubr.bf16.mxu0 0
        %1232 = vmatmul.mubr.bf16.gmra.mrb[0].mxu0 %v1166
        %v1233 = vpop.f32.mrb[0].mxu0
        %v1234 = vadd.f32 0.0, %v1233
        %v1235 = vpop.f32.mrb[0].mxu0
        %v1236 = vpop.f32.mrb[0].mxu0
        %v1237 = vadd.f32 0.0, %v1236
        %v1238 = vpop.f32.mrb[0].mxu0
        %1239 = vmatprep.mubr.bf16.mxu0 0
        %1240 = vmatmul.mubr.bf16.gmra.mrb[0].mxu0 %v1169
        %v1241 = vpop.f32.mrb[0].mxu0
        %v1242 = vadd.f32 0.0, %v1241
        %v1243 = vpop.f32.mrb[0].mxu0
        %v1244 = vpop.f32.mrb[0].mxu0
        %v1245 = vadd.f32 0.0, %v1244
        %v1246 = vpop.f32.mrb[0].mxu0
        %1247 = vmatprep.mubr.bf16.mxu0 0
        %1248 = vmatmul.mubr.bf16.gmra.mrb[0].mxu0 %v1172
        %v1249 = vpop.f32.mrb[0].mxu0
        %v1250 = vadd.f32 0.0, %v1249
        %v1251 = vpop.f32.mrb[0].mxu0
        %v1252 = vpop.f32.mrb[0].mxu0
        %v1253 = vadd.f32 0.0, %v1252
        %v1254 = vpop.f32.mrb[0].mxu0
        %1255 = vmatprep.mubr.bf16.mxu0 0
        %1256 = vmatmul.mubr.bf16.gmra.mrb[0].mxu0 %v1175
        %v1257 = vpop.f32.mrb[0].mxu0
        %v1258 = vadd.f32 0.0, %v1257
        %v1259 = vpop.f32.mrb[0].mxu0
        %v1260 = vpop.f32.mrb[0].mxu0
        %v1261 = vadd.f32 0.0, %v1260
        %v1262 = vpop.f32.mrb[0].mxu0
        %1263 = vmatprep.mubr.bf16.mxu0 0
        %1264 = vmatmul.mubr.bf16.gmra.mrb[0].mxu0 %v1178
        %v1265 = vpop.f32.mrb[0].mxu0
        %v1266 = vadd.f32 0.0, %v1265
        %v1267 = vpop.f32.mrb[0].mxu0
        %v1268 = vpop.f32.mrb[0].mxu0
        %v1269 = vadd.f32 0.0, %v1268
        %v1270 = vpop.f32.mrb[0].mxu0
        %1271 = vmatprep.mubr.bf16.mxu0 0
        %1272 = vmatmul.mubr.bf16.gmra.mrb[0].mxu0 %v1181
        %v1273 = vpop.f32.mrb[0].mxu0
        %v1274 = vadd.f32 0.0, %v1273
        %v1275 = vpop.f32.mrb[0].mxu0
        %v1276 = vpop.f32.mrb[0].mxu0
        %v1277 = vadd.f32 0.0, %v1276
        %v1278 = vpop.f32.mrb[0].mxu0
        %1279 = vdwg.mxu0
        %v1280 = vadd.f32 %v970, %v1218
        %v1281 = vadd.f32 %v971, %v1221
        %v1282 = vadd.f32 %v972, %v1226
        %v1283 = vadd.f32 %v973, %v1229
        %v1284 = vadd.f32 %v974, %v1234
        %v1285 = vadd.f32 %v975, %v1237
        %v1286 = vadd.f32 %v976, %v1242
        %v1287 = vadd.f32 %v977, %v1245
        %v1288 = vadd.f32 %v978, %v1250
        %v1289 = vadd.f32 %v979, %v1253
        %v1290 = vadd.f32 %v980, %v1258
        %v1291 = vadd.f32 %v981, %v1261
        %v1292 = vadd.f32 %v982, %v1266
        %v1293 = vadd.f32 %v983, %v1269
        %v1294 = vadd.f32 %v984, %v1274
        %v1295 = vadd.f32 %v985, %v1277
        %v1296 = vmax.f32 %v1280, 0.0
        %v1297 = vmax.f32 %v1281, 0.0
        %v1298 = vmax.f32 %v1282, 0.0
        %v1299 = vmax.f32 %v1283, 0.0
        %v1300 = vmax.f32 %v1284, 0.0
        %v1301 = vmax.f32 %v1285, 0.0
        %v1302 = vmax.f32 %v1286, 0.0
        %v1303 = vmax.f32 %v1287, 0.0
        %v1304 = vmax.f32 %v1288, 0.0
        %v1305 = vmax.f32 %v1289, 0.0
        %v1306 = vmax.f32 %v1290, 0.0
        %v1307 = vmax.f32 %v1291, 0.0
        %v1308 = vmax.f32 %v1292, 0.0
        %v1309 = vmax.f32 %v1293, 0.0
        %v1310 = vmax.f32 %v1294, 0.0
        %v1311 = vmax.f32 %v1295, 0.0
        %v1312 = vpack.c.bf16 %v1297, %v1296
        %v1313 = vpack.c.bf16 %v1299, %v1298
        %v1314 = vpack.c.bf16 %v1301, %v1300
        %v1315 = vpack.c.bf16 %v1303, %v1302
        %v1316 = vpack.c.bf16 %v1305, %v1304
        %v1317 = vpack.c.bf16 %v1307, %v1306
        %v1318 = vpack.c.bf16 %v1309, %v1308
        %v1319 = vpack.c.bf16 %v1311, %v1310
        %1320 = vmatprep.subr.bf16.mxu0 0
        %1321 = vmatpush1.bf16.msra.mxu0 %v1312
        %1322 = vmatprep.subr.bf16.mxu0 0
        %1323 = vmatpush1.bf16.msra.mxu0 %v1313
        %1324 = vmatprep.subr.bf16.mxu0 0
        %1325 = vmatpush1.bf16.msra.mxu0 %v1314
        %1326 = vmatprep.subr.bf16.mxu0 0
        %1327 = vmatpush1.bf16.msra.mxu0 %v1315
        %1328 = vmatprep.subr.bf16.mxu0 0
        %1329 = vmatpush1.bf16.msra.mxu0 %v1316
        %1330 = vmatprep.subr.bf16.mxu0 0
        %1331 = vmatpush1.bf16.msra.mxu0 %v1317
        %1332 = vmatprep.subr.bf16.mxu0 0
        %1333 = vmatpush1.bf16.msra.mxu0 %v1318
        %1334 = vmatprep.subr.bf16.mxu0 0
        %1335 = vmatpush1.bf16.msra.mxu0 %v1319
        %1336 = vmatprep.subr.bf16.mxu0 0
        %1337 = vmatpush1.bf16.msra.mxu0 0
        %1338 = vmatprep.subr.bf16.mxu0 0
        %1339 = vmatpush1.bf16.msra.mxu0 0
        %1340 = vmatprep.subr.bf16.mxu0 0
        %1341 = vmatpush1.bf16.msra.mxu0 0
        %1342 = vmatprep.subr.bf16.mxu0 0
        %1343 = vmatpush1.bf16.msra.mxu0 0
        %1344 = vmatprep.subr.bf16.mxu0 0
        %1345 = vmatpush1.bf16.msra.mxu0 0
        %1346 = vmatprep.subr.bf16.mxu0 0
        %1347 = vmatpush1.bf16.msra.mxu0 0
        %1348 = vmatprep.subr.bf16.mxu0 0
        %1349 = vmatpush1.bf16.msra.mxu0 0
        %1350 = vmatprep.subr.bf16.mxu0 0
        %1351 = vmatpush1.bf16.msra.mxu0 0
        %1352 = vmatprep.mubr.bf16.mxu0 0
        %1353 = vmatmul.mubr.bf16.gmra.mrb[0].mxu0 %v1026
        %v1354 = vpop.f32.mrb[0].mxu0
        %v1355 = vadd.f32 0.0, %v1354
        %v1356 = vpop.f32.mrb[0].mxu0
        %v1357 = vpop.f32.mrb[0].mxu0
        %v1358 = vadd.f32 0.0, %v1357
        %v1359 = vpop.f32.mrb[0].mxu0
        %1360 = vmatprep.mubr.bf16.mxu0 0
        %1361 = vmatmul.mubr.bf16.gmra.mrb[0].mxu0 %v1027
        %v1362 = vpop.f32.mrb[0].mxu0
        %v1363 = vadd.f32 0.0, %v1362
        %v1364 = vpop.f32.mrb[0].mxu0
        %v1365 = vpop.f32.mrb[0].mxu0
        %v1366 = vadd.f32 0.0, %v1365
        %v1367 = vpop.f32.mrb[0].mxu0
        %1368 = vmatprep.mubr.bf16.mxu0 0
        %1369 = vmatmul.mubr.bf16.gmra.mrb[0].mxu0 %v1028
        %v1370 = vpop.f32.mrb[0].mxu0
        %v1371 = vadd.f32 0.0, %v1370
        %v1372 = vpop.f32.mrb[0].mxu0
        %v1373 = vpop.f32.mrb[0].mxu0
        %v1374 = vadd.f32 0.0, %v1373
        %v1375 = vpop.f32.mrb[0].mxu0
        %1376 = vmatprep.mubr.bf16.mxu0 0
        %1377 = vmatmul.mubr.bf16.gmra.mrb[0].mxu0 %v1029
        %v1378 = vpop.f32.mrb[0].mxu0
        %v1379 = vadd.f32 0.0, %v1378
        %v1380 = vpop.f32.mrb[0].mxu0
        %v1381 = vpop.f32.mrb[0].mxu0
        %v1382 = vadd.f32 0.0, %v1381
        %v1383 = vpop.f32.mrb[0].mxu0
        %1384 = vmatprep.mubr.bf16.mxu0 0
        %1385 = vmatmul.mubr.bf16.gmra.mrb[0].mxu0 %v1030
        %v1386 = vpop.f32.mrb[0].mxu0
        %v1387 = vadd.f32 0.0, %v1386
        %v1388 = vpop.f32.mrb[0].mxu0
        %v1389 = vpop.f32.mrb[0].mxu0
        %v1390 = vadd.f32 0.0, %v1389
        %v1391 = vpop.f32.mrb[0].mxu0
        %1392 = vmatprep.mubr.bf16.mxu0 0
        %1393 = vmatmul.mubr.bf16.gmra.mrb[0].mxu0 %v1031
        %v1394 = vpop.f32.mrb[0].mxu0
        %v1395 = vadd.f32 0.0, %v1394
        %v1396 = vpop.f32.mrb[0].mxu0
        %v1397 = vpop.f32.mrb[0].mxu0
        %v1398 = vadd.f32 0.0, %v1397
        %v1399 = vpop.f32.mrb[0].mxu0
        %1400 = vmatprep.mubr.bf16.mxu0 0
        %1401 = vmatmul.mubr.bf16.gmra.mrb[0].mxu0 %v1032
        %v1402 = vpop.f32.mrb[0].mxu0
        %v1403 = vadd.f32 0.0, %v1402
        %v1404 = vpop.f32.mrb[0].mxu0
        %v1405 = vpop.f32.mrb[0].mxu0
        %v1406 = vadd.f32 0.0, %v1405
        %v1407 = vpop.f32.mrb[0].mxu0
        %1408 = vmatprep.mubr.bf16.mxu0 0
        %1409 = vmatmul.mubr.bf16.gmra.mrb[0].mxu0 %v1033
        %v1410 = vpop.f32.mrb[0].mxu0
        %v1411 = vadd.f32 0.0, %v1410
        %v1412 = vpop.f32.mrb[0].mxu0
        %v1413 = vpop.f32.mrb[0].mxu0
        %v1414 = vadd.f32 0.0, %v1413
        %v1415 = vpop.f32.mrb[0].mxu0
        %1416 = vdwg.mxu0
        %v1417 = vpack.c.bf16 %v1358, %v1355
        %v1418 = vpack.c.bf16 %v1366, %v1363
        %v1419 = vpack.c.bf16 %v1374, %v1371
        %v1420 = vpack.c.bf16 %v1382, %v1379
        %v1421 = vpack.c.bf16 %v1390, %v1387
        %v1422 = vpack.c.bf16 %v1398, %v1395
        %v1423 = vpack.c.bf16 %v1406, %v1403
        %v1424 = vpack.c.bf16 %v1414, %v1411
        %v1426 = vsel %vm826, %v1417, 0
        %v1429 = vsel %vm826, %v1418, 0
        %v1432 = vsel %vm826, %v1419, 0
        %v1435 = vsel %vm826, %v1420, 0
        %v1438 = vsel %vm826, %v1421, 0
        %v1441 = vsel %vm826, %v1422, 0
        %v1444 = vsel %vm826, %v1423, 0
        %v1447 = vsel %vm826, %v1424, 0
        %1449 = vmatprep.subr.bf16.mxu0 0
        %1450 = vmatpush1.bf16.msra.mxu0 %v1155
        %1451 = vmatprep.subr.bf16.mxu0 0
        %1452 = vmatpush1.bf16.msra.mxu0 %v1156
        %1453 = vmatprep.subr.bf16.mxu0 0
        %1454 = vmatpush1.bf16.msra.mxu0 0
        %1455 = vmatprep.subr.bf16.mxu0 0
        %1456 = vmatpush1.bf16.msra.mxu0 0
        %1457 = vmatprep.subr.bf16.mxu0 0
        %1458 = vmatpush1.bf16.msra.mxu0 0
        %1459 = vmatprep.subr.bf16.mxu0 0
        %1460 = vmatpush1.bf16.msra.mxu0 0
        %1461 = vmatprep.subr.bf16.mxu0 0
        %1462 = vmatpush1.bf16.msra.mxu0 0
        %1463 = vmatprep.subr.bf16.mxu0 0
        %1464 = vmatpush1.bf16.msra.mxu0 0
        %1465 = vmatprep.subr.bf16.mxu0 0
        %1466 = vmatpush1.bf16.msra.mxu0 0
        %1467 = vmatprep.subr.bf16.mxu0 0
        %1468 = vmatpush1.bf16.msra.mxu0 0
        %1469 = vmatprep.subr.bf16.mxu0 0
        %1470 = vmatpush1.bf16.msra.mxu0 0
        %1471 = vmatprep.subr.bf16.mxu0 0
        %1472 = vmatpush1.bf16.msra.mxu0 0
        %1473 = vmatprep.subr.bf16.mxu0 0
        %1474 = vmatpush1.bf16.msra.mxu0 0
        %1475 = vmatprep.subr.bf16.mxu0 0
        %1476 = vmatpush1.bf16.msra.mxu0 0
        %1477 = vmatprep.subr.bf16.mxu0 0
        %1478 = vmatpush1.bf16.msra.mxu0 0
        %1479 = vmatprep.subr.bf16.mxu0 0
        %1480 = vmatpush1.bf16.msra.mxu0 0
        %1481 = vmatprep.mubr.bf16.mxu0 0
        %1482 = vmatmul.mubr.bf16.gmra.mrb[0].mxu0 %v1426
        %v1483 = vpop.f32.mrb[0].mxu0
        %v1484 = vadd.f32 0.0, %v1483
        %v1485 = vpop.f32.mrb[0].mxu0
        %v1486 = vpop.f32.mrb[0].mxu0
        %v1487 = vadd.f32 0.0, %v1486
        %v1488 = vpop.f32.mrb[0].mxu0
        %1489 = vmatprep.mubr.bf16.mxu0 0
        %1490 = vmatmul.mubr.bf16.gmra.mrb[0].mxu0 %v1429
        %v1491 = vpop.f32.mrb[0].mxu0
        %v1492 = vadd.f32 0.0, %v1491
        %v1493 = vpop.f32.mrb[0].mxu0
        %v1494 = vpop.f32.mrb[0].mxu0
        %v1495 = vadd.f32 0.0, %v1494
        %v1496 = vpop.f32.mrb[0].mxu0
        %1497 = vmatprep.mubr.bf16.mxu0 0
        %1498 = vmatmul.mubr.bf16.gmra.mrb[0].mxu0 %v1432
        %v1499 = vpop.f32.mrb[0].mxu0
        %v1500 = vadd.f32 0.0, %v1499
        %v1501 = vpop.f32.mrb[0].mxu0
        %v1502 = vpop.f32.mrb[0].mxu0
        %v1503 = vadd.f32 0.0, %v1502
        %v1504 = vpop.f32.mrb[0].mxu0
        %1505 = vmatprep.mubr.bf16.mxu0 0
        %1506 = vmatmul.mubr.bf16.gmra.mrb[0].mxu0 %v1435
        %v1507 = vpop.f32.mrb[0].mxu0
        %v1508 = vadd.f32 0.0, %v1507
        %v1509 = vpop.f32.mrb[0].mxu0
        %v1510 = vpop.f32.mrb[0].mxu0
        %v1511 = vadd.f32 0.0, %v1510
        %v1512 = vpop.f32.mrb[0].mxu0
        %1513 = vmatprep.mubr.bf16.mxu0 0
        %1514 = vmatmul.mubr.bf16.gmra.mrb[0].mxu0 %v1438
        %v1515 = vpop.f32.mrb[0].mxu0
        %v1516 = vadd.f32 0.0, %v1515
        %v1517 = vpop.f32.mrb[0].mxu0
        %v1518 = vpop.f32.mrb[0].mxu0
        %v1519 = vadd.f32 0.0, %v1518
        %v1520 = vpop.f32.mrb[0].mxu0
        %1521 = vmatprep.mubr.bf16.mxu0 0
        %1522 = vmatmul.mubr.bf16.gmra.mrb[0].mxu0 %v1441
        %v1523 = vpop.f32.mrb[0].mxu0
        %v1524 = vadd.f32 0.0, %v1523
        %v1525 = vpop.f32.mrb[0].mxu0
        %v1526 = vpop.f32.mrb[0].mxu0
        %v1527 = vadd.f32 0.0, %v1526
        %v1528 = vpop.f32.mrb[0].mxu0
        %1529 = vmatprep.mubr.bf16.mxu0 0
        %1530 = vmatmul.mubr.bf16.gmra.mrb[0].mxu0 %v1444
        %v1531 = vpop.f32.mrb[0].mxu0
        %v1532 = vadd.f32 0.0, %v1531
        %v1533 = vpop.f32.mrb[0].mxu0
        %v1534 = vpop.f32.mrb[0].mxu0
        %v1535 = vadd.f32 0.0, %v1534
        %v1536 = vpop.f32.mrb[0].mxu0
        %1537 = vmatprep.mubr.bf16.mxu0 0
        %1538 = vmatmul.mubr.bf16.gmra.mrb[0].mxu0 %v1447
        %v1539 = vpop.f32.mrb[0].mxu0
        %v1540 = vadd.f32 0.0, %v1539
        %v1541 = vpop.f32.mrb[0].mxu0
        %v1542 = vpop.f32.mrb[0].mxu0
        %v1543 = vadd.f32 0.0, %v1542
        %v1544 = vpop.f32.mrb[0].mxu0
        %1545 = vdwg.mxu0
        %v1546 = vadd.f32 %v970, %v1484
        %v1547 = vadd.f32 %v971, %v1487
        %v1548 = vadd.f32 %v972, %v1492
        %v1549 = vadd.f32 %v973, %v1495
        %v1550 = vadd.f32 %v974, %v1500
        %v1551 = vadd.f32 %v975, %v1503
        %v1552 = vadd.f32 %v976, %v1508
        %v1553 = vadd.f32 %v977, %v1511
        %v1554 = vadd.f32 %v978, %v1516
        %v1555 = vadd.f32 %v979, %v1519
        %v1556 = vadd.f32 %v980, %v1524
        %v1557 = vadd.f32 %v981, %v1527
        %v1558 = vadd.f32 %v982, %v1532
        %v1559 = vadd.f32 %v983, %v1535
        %v1560 = vadd.f32 %v984, %v1540
        %v1561 = vadd.f32 %v985, %v1543
        %v1562 = vmax.f32 %v1546, 0.0
        %v1563 = vmax.f32 %v1547, 0.0
        %v1564 = vmax.f32 %v1548, 0.0
        %v1565 = vmax.f32 %v1549, 0.0
        %v1566 = vmax.f32 %v1550, 0.0
        %v1567 = vmax.f32 %v1551, 0.0
        %v1568 = vmax.f32 %v1552, 0.0
        %v1569 = vmax.f32 %v1553, 0.0
        %v1570 = vmax.f32 %v1554, 0.0
        %v1571 = vmax.f32 %v1555, 0.0
        %v1572 = vmax.f32 %v1556, 0.0
        %v1573 = vmax.f32 %v1557, 0.0
        %v1574 = vmax.f32 %v1558, 0.0
        %v1575 = vmax.f32 %v1559, 0.0
        %v1576 = vmax.f32 %v1560, 0.0
        %v1577 = vmax.f32 %v1561, 0.0
        %v1578 = vld [vmem:[%s566] sm:$0xf]
        %v1579 = vld [vmem:[%s566 + $0x4] sm:$0xf]
        %v1580 = vld [vmem:[%s566 + $0x8] sm:$0xf]
        %v1581 = vld [vmem:[%s566 + $0xc] sm:$0xf]
        %v1582 = vpack.c.bf16 %v1563, %v1562
        %v1583 = vpack.c.bf16 %v1565, %v1564
        %v1584 = vpack.c.bf16 %v1567, %v1566
        %v1585 = vpack.c.bf16 %v1569, %v1568
        %v1586 = vpack.c.bf16 %v1571, %v1570
        %v1587 = vpack.c.bf16 %v1573, %v1572
        %v1588 = vpack.c.bf16 %v1575, %v1574
        %v1589 = vpack.c.bf16 %v1577, %v1576
        %v1594 = vunpack.c.l.b16 %v1578
        %v1595 = vunpack.c.l.b16 %v1579
        %v1596 = vunpack.c.l.b16 %v1580
        %v1597 = vunpack.c.l.b16 %v1581
        %v1598 = vpack.c.b16 %v1595, %v1594
        %v1599 = vpack.c.b16 %v1597, %v1596
        %1602 = vmatprep.subr.bf16.mxu0 0
        %1603 = vmatpush1.bf16.msra.mxu0 %v1582
        %1604 = vmatprep.subr.bf16.mxu0 0
        %1605 = vmatpush1.bf16.msra.mxu0 %v1583
        %1606 = vmatprep.subr.bf16.mxu0 0
        %1607 = vmatpush1.bf16.msra.mxu0 %v1584
        %1608 = vmatprep.subr.bf16.mxu0 0
        %1609 = vmatpush1.bf16.msra.mxu0 %v1585
        %1610 = vmatprep.subr.bf16.mxu0 0
        %1611 = vmatpush1.bf16.msra.mxu0 %v1586
        %1612 = vmatprep.subr.bf16.mxu0 0
        %1613 = vmatpush1.bf16.msra.mxu0 %v1587
        %1614 = vmatprep.subr.bf16.mxu0 0
        %1615 = vmatpush1.bf16.msra.mxu0 %v1588
        %1616 = vmatprep.subr.bf16.mxu0 0
        %1617 = vmatpush1.bf16.msra.mxu0 %v1589
        %1618 = vmatprep.subr.bf16.mxu0 0
        %1619 = vmatpush1.bf16.msra.mxu0 0
        %1620 = vmatprep.subr.bf16.mxu0 0
        %1621 = vmatpush1.bf16.msra.mxu0 0
        %1622 = vmatprep.subr.bf16.mxu0 0
        %1623 = vmatpush1.bf16.msra.mxu0 0
        %1624 = vmatprep.subr.bf16.mxu0 0
        %1625 = vmatpush1.bf16.msra.mxu0 0
        %1626 = vmatprep.subr.bf16.mxu0 0
        %1627 = vmatpush1.bf16.msra.mxu0 0
        %1628 = vmatprep.subr.bf16.mxu0 0
        %1629 = vmatpush1.bf16.msra.mxu0 0
        %1630 = vmatprep.subr.bf16.mxu0 0
        %1631 = vmatpush1.bf16.msra.mxu0 0
        %1632 = vmatprep.subr.bf16.mxu0 0
        %1633 = vmatpush1.bf16.msra.mxu0 0
        %1634 = vmatprep.mubr.bf16.mxu0 0
        %1635 = vmatmul.mubr.bf16.gmra.mrb[0].mxu0 %v1598
        %v1636 = vpop.f32.mrb[0].mxu0
        %v1637 = vadd.f32 0.0, %v1636
        %v1638 = vpop.f32.mrb[0].mxu0
        %v1639 = vpop.f32.mrb[0].mxu0
        %v1640 = vadd.f32 0.0, %v1639
        %v1641 = vpop.f32.mrb[0].mxu0
        %1642 = vmatprep.mubr.bf16.mxu0 0
        %1643 = vmatmul.mubr.bf16.gmra.mrb[0].mxu0 %v1599
        %v1644 = vpop.f32.mrb[0].mxu0
        %v1645 = vadd.f32 0.0, %v1644
        %v1646 = vpop.f32.mrb[0].mxu0
        %v1647 = vpop.f32.mrb[0].mxu0
        %v1648 = vadd.f32 0.0, %v1647
        %v1649 = vpop.f32.mrb[0].mxu0
        %1650 = vdwg.mxu0
        %v1651 = vld [vmem:[%s705] sm:$0xf]
        %v1652 = vld [vmem:[%s705 + $0x4] sm:$0xf]
        %v1653 = vld [vmem:[%s705 + $0x8] sm:$0xf]
        %v1654 = vld [vmem:[%s705 + $0xc] sm:$0xf]
        %v1655 = vld [vmem:[%s602] sm:$0xf]
        %v1656 = vld [vmem:[%s602 + $0x4] sm:$0xf]
        %v1657 = vld [vmem:[%s602 + $0x8] sm:$0xf]
        %v1658 = vld [vmem:[%s602 + $0xc] sm:$0xf]
        %v1659 = vpack.c.bf16 %v1640, %v1637
        %v1660 = vpack.c.bf16 %v1648, %v1645
        %v1661 = vld [vmem:[%s611] sm:$0xf]
        %v1662 = vld [vmem:[%s611 + $0x4] sm:$0xf]
        %v1663 = vld [vmem:[%s611 + $0x8] sm:$0xf]
        %v1664 = vld [vmem:[%s611 + $0xc] sm:$0xf]
        %v1669 = vunpack.c.l.b16 %v1661
        %v1670 = vunpack.c.l.b16 %v1662
        %v1671 = vunpack.c.l.b16 %v1663
        %v1672 = vunpack.c.l.b16 %v1664
        %v1673 = vpack.c.b16 %v1670, %v1669
        %v1674 = vpack.c.b16 %v1672, %v1671
        %v1678 = vsel %vm826, %v1659, 0
        %v1681 = vsel %vm826, %v1660, 0
        %1683 = vmatprep.subr.bf16.mxu0 0
        %1684 = vmatpush1.bf16.msra.mxu0 %v1673
        %1685 = vmatprep.subr.bf16.mxu0 0
        %1686 = vmatpush1.bf16.msra.mxu0 %v1674
        %1687 = vmatprep.subr.bf16.mxu0 0
        %1688 = vmatpush1.bf16.msra.mxu0 0
        %1689 = vmatprep.subr.bf16.mxu0 0
        %1690 = vmatpush1.bf16.msra.mxu0 0
        %1691 = vmatprep.subr.bf16.mxu0 0
        %1692 = vmatpush1.bf16.msra.mxu0 0
        %1693 = vmatprep.subr.bf16.mxu0 0
        %1694 = vmatpush1.bf16.msra.mxu0 0
        %1695 = vmatprep.subr.bf16.mxu0 0
        %1696 = vmatpush1.bf16.msra.mxu0 0
        %1697 = vmatprep.subr.bf16.mxu0 0
        %1698 = vmatpush1.bf16.msra.mxu0 0
        %1699 = vmatprep.subr.bf16.mxu0 0
        %1700 = vmatpush1.bf16.msra.mxu0 0
        %1701 = vmatprep.subr.bf16.mxu0 0
        %1702 = vmatpush1.bf16.msra.mxu0 0
        %1703 = vmatprep.subr.bf16.mxu0 0
        %1704 = vmatpush1.bf16.msra.mxu0 0
        %1705 = vmatprep.subr.bf16.mxu0 0
        %1706 = vmatpush1.bf16.msra.mxu0 0
        %1707 = vmatprep.subr.bf16.mxu0 0
        %1708 = vmatpush1.bf16.msra.mxu0 0
        %1709 = vmatprep.subr.bf16.mxu0 0
        %1710 = vmatpush1.bf16.msra.mxu0 0
        %1711 = vmatprep.subr.bf16.mxu0 0
        %1712 = vmatpush1.bf16.msra.mxu0 0
        %1713 = vmatprep.subr.bf16.mxu0 0
        %1714 = vmatpush1.bf16.msra.mxu0 0
        %1715 = vmatprep.mubr.bf16.mxu0 0
        %1716 = vmatmul.mubr.bf16.gmra.mrb[0].mxu0 %v1678
        %v1717 = vpop.f32.mrb[0].mxu0
        %v1718 = vadd.f32 0.0, %v1717
        %v1719 = vpop.f32.mrb[0].mxu0
        %v1720 = vpop.f32.mrb[0].mxu0
        %v1721 = vadd.f32 0.0, %v1720
        %v1722 = vpop.f32.mrb[0].mxu0
        %1723 = vmatprep.mubr.bf16.mxu0 0
        %1724 = vmatmul.mubr.bf16.gmra.mrb[0].mxu0 %v1681
        %v1725 = vpop.f32.mrb[0].mxu0
        %v1726 = vadd.f32 0.0, %v1725
        %v1727 = vpop.f32.mrb[0].mxu0
        %v1728 = vpop.f32.mrb[0].mxu0
        %v1729 = vadd.f32 0.0, %v1728
        %v1730 = vpop.f32.mrb[0].mxu0
        %1731 = vdwg.mxu0
        %v1736 = vunpack.c.l.b16 %v1651
        %v1737 = vunpack.c.l.b16 %v1652
        %v1738 = vunpack.c.l.b16 %v1653
        %v1739 = vunpack.c.l.b16 %v1654
        %v1740 = vpack.c.b16 %v1737, %v1736
        %v1741 = vpack.c.b16 %v1739, %v1738
        %v1746 = vunpack.c.l.b16 %v1655
        %v1747 = vunpack.c.l.b16 %v1656
        %v1748 = vunpack.c.l.b16 %v1657
        %v1749 = vunpack.c.l.b16 %v1658
        %v1750 = vpack.c.b16 %v1747, %v1746
        %v1751 = vpack.c.b16 %v1749, %v1748
        %v1755 = vsel %vm826, %v1740, 0
        %v1758 = vsel %vm826, %v1741, 0
        %1760 = vmatprep.subr.bf16.mxu0 0
        %1761 = vmatpush1.bf16.msra.mxu0 %v1750
        %1762 = vmatprep.subr.bf16.mxu0 0
        %1763 = vmatpush1.bf16.msra.mxu0 %v1751
        %1764 = vmatprep.subr.bf16.mxu0 0
        %1765 = vmatpush1.bf16.msra.mxu0 0
        %1766 = vmatprep.subr.bf16.mxu0 0
        %1767 = vmatpush1.bf16.msra.mxu0 0
        %1768 = vmatprep.subr.bf16.mxu0 0
        %1769 = vmatpush1.bf16.msra.mxu0 0
        %1770 = vmatprep.subr.bf16.mxu0 0
        %1771 = vmatpush1.bf16.msra.mxu0 0
        %1772 = vmatprep.subr.bf16.mxu0 0
        %1773 = vmatpush1.bf16.msra.mxu0 0
        %1774 = vmatprep.subr.bf16.mxu0 0
        %1775 = vmatpush1.bf16.msra.mxu0 0
        %1776 = vmatprep.subr.bf16.mxu0 0
        %1777 = vmatpush1.bf16.msra.mxu0 0
        %1778 = vmatprep.subr.bf16.mxu0 0
        %1779 = vmatpush1.bf16.msra.mxu0 0
        %1780 = vmatprep.subr.bf16.mxu0 0
        %1781 = vmatpush1.bf16.msra.mxu0 0
        %1782 = vmatprep.subr.bf16.mxu0 0
        %1783 = vmatpush1.bf16.msra.mxu0 0
        %1784 = vmatprep.subr.bf16.mxu0 0
        %1785 = vmatpush1.bf16.msra.mxu0 0
        %1786 = vmatprep.subr.bf16.mxu0 0
        %1787 = vmatpush1.bf16.msra.mxu0 0
        %1788 = vmatprep.subr.bf16.mxu0 0
        %1789 = vmatpush1.bf16.msra.mxu0 0
        %1790 = vmatprep.subr.bf16.mxu0 0
        %1791 = vmatpush1.bf16.msra.mxu0 0
        %1792 = vmatprep.mubr.bf16.mxu0 0
        %1793 = vmatmul.mubr.bf16.gmra.mrb[0].mxu0 %v1755
        %v1794 = vpop.f32.mrb[0].mxu0
        %v1795 = vadd.f32 %v1718, %v1794
        %v1796 = vpop.f32.mrb[0].mxu0
        %v1797 = vpop.f32.mrb[0].mxu0
        %v1798 = vadd.f32 %v1721, %v1797
        %v1799 = vpop.f32.mrb[0].mxu0
        %1800 = vmatprep.mubr.bf16.mxu0 0
        %1801 = vmatmul.mubr.bf16.gmra.mrb[0].mxu0 %v1758
        %v1802 = vpop.f32.mrb[0].mxu0
        %v1803 = vadd.f32 %v1726, %v1802
        %v1804 = vpop.f32.mrb[0].mxu0
        %v1805 = vpop.f32.mrb[0].mxu0
        %v1806 = vadd.f32 %v1729, %v1805
        %v1807 = vpop.f32.mrb[0].mxu0
        %1808 = vdwg.mxu0
        %v1809 = vld [vmem:[%s724] sm:$0x1]
        %v1811 = vlaneseq
        %v1812 = vshrl.u32 %v1811, 7
        %v1813 = vsub.s32 0, %v1812
        %v1814 = vrot.slane %v1809, %v1813
        %v1816 = vadd.f32 %v1795, %v1814
        %v1817 = vadd.f32 %v1798, %v1814
        %v1818 = vadd.f32 %v1803, %v1814
        %v1819 = vadd.f32 %v1806, %v1814
        %v1820 = vmax.f32 %v1816, 0.0
        %v1821 = vmax.f32 %v1817, 0.0
        %v1822 = vmax.f32 %v1818, 0.0
        %v1823 = vmax.f32 %v1819, 0.0
        %v1824 = vld [vmem:[%s575] sm:$0xff]
        %v1826 = vsel %vm826, %v1824, 0
        %1828 = vmatprep.subr.mxu0 0.0
        %1829 = vmatpush1.msra.mxu0 %v1820
        %1830 = vmatprep.subr.mxu0 0.0
        %1831 = vmatpush1.msra.mxu0 %v1821
        %1832 = vmatprep.subr.mxu0 0.0
        %1833 = vmatpush1.msra.mxu0 %v1822
        %1834 = vmatprep.subr.mxu0 0.0
        %1835 = vmatpush1.msra.mxu0 %v1823
        %1836 = vmatprep.subr.mxu0 0.0
        %1837 = vmatpush1.msra.mxu0 0.0
        %1838 = vmatprep.subr.mxu0 0.0
        %1839 = vmatpush1.msra.mxu0 0.0
        %1840 = vmatprep.subr.mxu0 0.0
        %1841 = vmatpush1.msra.mxu0 0.0
        %1842 = vmatprep.subr.mxu0 0.0
        %1843 = vmatpush1.msra.mxu0 0.0
        %1844 = vmatprep.subr.mxu0 0.0
        %1845 = vmatpush1.msra.mxu0 0.0
        %1846 = vmatprep.subr.mxu0 0.0
        %1847 = vmatpush1.msra.mxu0 0.0
        %1848 = vmatprep.subr.mxu0 0.0
        %1849 = vmatpush1.msra.mxu0 0.0
        %1850 = vmatprep.subr.mxu0 0.0
        %1851 = vmatpush1.msra.mxu0 0.0
        %1852 = vmatprep.subr.mxu0 0.0
        %1853 = vmatpush1.msra.mxu0 0.0
        %1854 = vmatprep.subr.mxu0 0.0
        %1855 = vmatpush1.msra.mxu0 0.0
        %1856 = vmatprep.subr.mxu0 0.0
        %1857 = vmatpush1.msra.mxu0 0.0
        %1858 = vmatprep.subr.mxu0 0.0
        %1859 = vmatpush1.msra.mxu0 0.0
        %1860 = vmatprep.subr.mxu0 0.0
        %1861 = vmatpush1.msra.mxu0 0.0
        %1862 = vmatprep.subr.mxu0 0.0
        %1863 = vmatpush1.msra.mxu0 0.0
        %1864 = vmatprep.subr.mxu0 0.0
        %1865 = vmatpush1.msra.mxu0 0.0
        %1866 = vmatprep.subr.mxu0 0.0
        %1867 = vmatpush1.msra.mxu0 0.0
        %1868 = vmatprep.subr.mxu0 0.0
        %1869 = vmatpush1.msra.mxu0 0.0
        %1870 = vmatprep.subr.mxu0 0.0
        %1871 = vmatpush1.msra.mxu0 0.0
        %1872 = vmatprep.subr.mxu0 0.0
        %1873 = vmatpush1.msra.mxu0 0.0
        %1874 = vmatprep.subr.mxu0 0.0
        %1875 = vmatpush1.msra.mxu0 0.0
        %1876 = vmatprep.subr.mxu0 0.0
        %1877 = vmatpush1.msra.mxu0 0.0
        %1878 = vmatprep.subr.mxu0 0.0
        %1879 = vmatpush1.msra.mxu0 0.0
        %1880 = vmatprep.subr.mxu0 0.0
        %1881 = vmatpush1.msra.mxu0 0.0
        %1882 = vmatprep.subr.mxu0 0.0
        %1883 = vmatpush1.msra.mxu0 0.0
        %1884 = vmatprep.subr.mxu0 0.0
        %1885 = vmatpush1.msra.mxu0 0.0
        %1886 = vmatprep.subr.mxu0 0.0
        %1887 = vmatpush1.msra.mxu0 0.0
        %1888 = vmatprep.subr.mxu0 0.0
        %1889 = vmatpush1.msra.mxu0 0.0
        %1890 = vmatprep.subr.mxu0 0.0
        %1891 = vmatpush1.msra.mxu0 0.0
        %1892 = vmatprep.mubr.f32.mxu0 0.0
        %1893 = vmatmul.mubr.f32.gmra.mrb[0].mxu0 %v1826
        %v1894 = vpop.f32.mrb[0].mxu0
        %v1895 = vadd.f32 0.0, %v1894
        %v1896 = vpop.f32.mrb[0].mxu0
        %1897 = vdwg.mxu0
        %1898 = vst [vmem:[%s700] sm:$0xff] %v1895
        %s1899 = sand.u32 %s358, 1
        %s1900 = scalar_lea.sflag [#allocation4], %s1899
        %s1901 = sand.u32 %s358, 1
        %s1902 = smul.addr %s1901, 8
        %s1903 = scalar_lea.vmem [#allocation13], %s1902
        // Predicated region
        $region93: #{tpu_custom_call.1} parent=67 // pred_check
          %p1904 = pneg %p368
        $region94: #{tpu_custom_call.1} parent=67 // pred_check_branch
          %1906 = sbr.rel (%p1904) target = $region96
        $region95: #{tpu_custom_call.1} parent=67 // pred_region
          %s1908 = ssub.s32 128, 128
          %1909 = vsyncadd %s1900, %s1908
          %s1910 = smul.addr %s38, 128
          %s1911 = scalar_lea.hbm %s12, %s1910
          %s1913 = sshll.u32 %s1903, 4
          %s1914 = int_to_ptr.vmem [resolvable:$true] %s1913
          %1916 = dma.vmem_to_hbm [thread:$0]  %s1914, 128, %s1911, %s1900
        $region96: #{tpu_custom_call.1} parent=67 // pred_fallthru
          _
      $region68: #{tpu_custom_call.1} parent=5 // pred_fallthru
        _
      %p1917 = scmp.le.s32.totalorder 2, %s33
      // Predicated region
      $region97: #{tpu_custom_call.1} parent=5 // pred_check
        %p1918 = pneg %p1917
      $region98: #{tpu_custom_call.1} parent=5 // pred_check_branch
        %1920 = sbr.rel (%p1918) target = $region100
      $region99: #{tpu_custom_call.1} parent=5 // pred_region
        %s1921 = ssub.s32 %s33, 2
        // Predicated region
        $region101: #{tpu_custom_call.1} parent=99 // pred_check
          %p1922 = pneg %p374
        $region102: #{tpu_custom_call.1} parent=99 // pred_check_branch
          %1924 = sbr.rel (%p1922) target = $region104
        $region103: #{tpu_custom_call.1} parent=99 // pred_region
          %s1925 = sand.u32 %s359, 1
          %s1926 = scalar_lea.sflag [#allocation4], %s1925
          %s1927 = sand.u32 %s359, 1
          %s1928 = smul.addr %s1927, 8
          %s1929 = scalar_lea.vmem [#allocation13], %s1928
          %1930 = dma.done %s1926, 128
        $region104: #{tpu_custom_call.1} parent=99 // pred_fallthru
          _
      $region100: #{tpu_custom_call.1} parent=5 // pred_fallthru
        _
    $region6: #{tpu_custom_call.1} parent=1 // loop_footer
      %s37 = sadd.s32 1, %s33
    $region7: #{tpu_custom_call.1} parent=1 // loop_footer_branch
      %32 = sbr.rel target = $region3
    $region8: #{tpu_custom_call.1} parent=1 // loop_exit
      _
    %1931 = vsyncpa [#allocation3], 1
    %s1932 = scalar_lea.sflag [#allocation3], 1
    %1933 = vsyncpa %s1932, 1
    %1934 = vsyncpa [#allocation6], 1
    %s1935 = scalar_lea.sflag [#allocation6], 1
    %1936 = vsyncpa %s1935, 1
    %1937 = vsyncpa [#allocation9], 1
    %s1938 = scalar_lea.sflag [#allocation9], 1
    %1939 = vsyncpa %s1938, 1
    %1940 = vsyncpa [#allocation12], 1
    %s1941 = scalar_lea.sflag [#allocation12], 1
    %1942 = vsyncpa %s1941, 1
    %1943 = vsyncpa [#allocation4], 1
    %s1944 = scalar_lea.sflag [#allocation4], 1
    %1945 = vsyncpa %s1944, 1

</llo_original>
